<compile_context>
chip_gen: v6e
topology: v6e:2x2x1
jax: 0.10.0
libtpu: 0.0.40
codegen_flags: <defaults>
</compile_context>

<pallas_src>
import jax
import jax.numpy as jnp
from jax import lax
from jax.experimental import pallas as pl
from jax.experimental.pallas import tpu as pltpu

_GATE_PAD = 128  # per-gate lane block -> lane-aligned (free) gate slices


def _lstm_kernel(x_ref, wih_ref, whh_ref, b_ref, fcw_ref, fcb_ref, out_ref):
    # x_ref   : (T, B, I)    time-major input
    # wih_ref : (I, 4*GP)    input->gate weights, gate g at lanes [g*GP, g*GP+H)
    #                        (i/f/o columns pre-scaled by 0.5 for the tanh trick)
    # whh_ref : (H, 4*GP)    hidden->gate weights, same layout / scaling
    # b_ref   : (1, 4*GP)    b_ih + b_hh, same layout / scaling
    # fcw_ref : (GP, 1)      final Linear weight (transposed, zero-padded H->GP)
    # fcb_ref : (1, 1)       final Linear bias
    # out_ref : (B, 1)       fc(output[:, -1, :])
    T, B, I = x_ref.shape
    H = whh_ref.shape[0]
    G4 = whh_ref.shape[1]
    GP = G4 // 4

    # ---- Hoisted loads: weights/bias stay resident for the whole loop. ----
    wih = wih_ref[...]                         # (I, 4*GP)
    whh = whh_ref[...]                         # (H, 4*GP)
    b = b_ref[...]                             # (1, 4*GP)
    x = x_ref[...]                             # (T, B, I)

    # ---- Input projection hoisted out of the recurrence (VPU broadcast FMA). ----
    # xg_all[t] = x[t] @ W_ih^T + (b_ih + b_hh)
    xg_all = x[:, :, 0:1] * wih[0:1, :] + b    # (T, B, 4*GP)
    for i in range(1, I):                      # static; I == 1 here
        xg_all = xg_all + x[:, :, i:i + 1] * wih[i:i + 1, :]

    # ---- Serial recurrence: state in vregs, loop fully unrolled (T static). ----
    # Padded lanes [H:GP) of h/c provably stay exactly 0 (zero weights/bias).
    h = jnp.zeros((B, GP), jnp.float32)
    c = jnp.zeros((B, GP), jnp.float32)
    for t in range(T):
        gates = xg_all[t] + jnp.dot(h[:, :H], whh,
                                    preferred_element_type=jnp.float32)  # (B, 4*GP)
        # One tanh over the whole gate block; sigmoid(z) = 0.5*(tanh(z/2)+1)
        # (i/f/o pre-activations were pre-scaled by 0.5 in the wrapper).
        tg = jnp.tanh(gates)
        i_g = 0.5 * (tg[:, 0 * GP:1 * GP] + 1.0)
        f_g = 0.5 * (tg[:, 1 * GP:2 * GP] + 1.0)
        g_g = tg[:, 2 * GP:3 * GP]
        o_g = 0.5 * (tg[:, 3 * GP:4 * GP] + 1.0)
        c = f_g * c + i_g * g_g
        h = o_g * jnp.tanh(c)

    # ---- Final Linear on the last hidden state. ----
    # TODO(synk): at large B, emit a lane-dense output and add a parallel batch
    # grid (v7x megacore / VMEM bound); at B=4 the masked (B, 1) store is negligible.
    out_ref[...] = (jnp.dot(h, fcw_ref[...], preferred_element_type=jnp.float32)
                    + fcb_ref[...])            # (B, 1)


def lstm_forward(x_bti, w_ih, w_hh, b_ih, b_hh, fc_w, fc_b):
    """Matches LSTM.forward(inputs): returns shape (B,) float32."""
    B, T, I = x_bti.shape
    H4, H = w_hh.shape                                         # w_hh: (4H, H)
    assert H4 == 4 * H and H <= _GATE_PAD
    GP = _GATE_PAD
    f32 = jnp.float32

    x_tbi = jnp.transpose(x_bti, (1, 0, 2)).astype(f32)        # (T, B, I)

    # Pre-scale i/f/o gate rows by 0.5 so the kernel uses a single tanh:
    # sigmoid(z) = 0.5 * (tanh(z/2) + 1). Gate order (i, f, g, o).
    gate_scale = jnp.concatenate([jnp.full((H,), 0.5, f32),
                                  jnp.full((H,), 0.5, f32),
                                  jnp.ones((H,), f32),
                                  jnp.full((H,), 0.5, f32)])   # (4H,)
    w_ih_s = w_ih.astype(f32) * gate_scale[:, None]            # (4H, I)
    w_hh_s = w_hh.astype(f32) * gate_scale[:, None]            # (4H, H)
    b_s = (b_ih + b_hh).astype(f32) * gate_scale               # (4H,)

    def pad_gate_lanes(m_t):   # (K, 4H) -> (K, 4*GP); gate g at lanes [g*GP, g*GP+H)
        K = m_t.shape[0]
        out = jnp.zeros((K, 4 * GP), f32)
        for g in range(4):
            out = out.at[:, g * GP:g * GP + H].set(m_t[:, g * H:(g + 1) * H])
        return out

    wih_p = pad_gate_lanes(w_ih_s.T)                           # (I, 4*GP)
    whh_p = pad_gate_lanes(w_hh_s.T)                           # (H, 4*GP)
    b_p = pad_gate_lanes(b_s.reshape(1, 4 * H))                # (1, 4*GP)
    fcw_p = jnp.zeros((GP, 1), f32).at[:H, :].set(fc_w.astype(f32).T)  # (GP, 1)
    fcb = fc_b.reshape(1, 1).astype(f32)                       # (1, 1)

    vmem = pl.BlockSpec(memory_space=pltpu.MemorySpace.VMEM)
    out = pl.pallas_call(
        _lstm_kernel,
        out_shape=jax.ShapeDtypeStruct((B, 1), f32),
        in_specs=[vmem] * 6,
        out_specs=vmem,
    )(x_tbi, wih_p, whh_p, b_p, fcw_p, fcb)
    return out.reshape(-1)                                     # (B,)


def lstm_reference(x_bti, w_ih, w_hh, b_ih, b_hh, fc_w, fc_b):
    """Pure-JAX reference of the same forward pass (standard sigmoid/tanh)."""
    B, T, I = x_bti.shape
    H = w_hh.shape[1]
    h = jnp.zeros((B, H), jnp.float32)
    c = jnp.zeros((B, H), jnp.float32)

    def step(carry, x_t):
        h, c = carry
        gates = x_t @ w_ih.T + h @ w_hh.T + b_ih + b_hh
        i_g = jax.nn.sigmoid(gates[:, 0:H])
        f_g = jax.nn.sigmoid(gates[:, H:2 * H])
        g_g = jnp.tanh(gates[:, 2 * H:3 * H])
        o_g = jax.nn.sigmoid(gates[:, 3 * H:4 * H])
        c = f_g * c + i_g * g_g
        h = o_g * jnp.tanh(c)
        return (h, c), None

    (h, c), _ = lax.scan(step, (h, c), jnp.transpose(x_bti, (1, 0, 2)))
    return (h @ fc_w.T + fc_b).reshape(-1)


if __name__ == "__main__":
    input_size, hidden_size = 1, 10
    B, T = 4, 8

    key = jax.random.PRNGKey(0)
    ks = jax.random.split(key, 8)
    k = 1.0 / jnp.sqrt(jnp.float32(hidden_size))
    u = lambda kk, shape: jax.random.uniform(kk, shape, jnp.float32, -k, k)

    # nn.LSTM parameters (PyTorch shapes), deterministic init
    w_ih = u(ks[0], (4 * hidden_size, input_size))
    w_hh = u(ks[1], (4 * hidden_size, hidden_size))
    b_ih = u(ks[2], (4 * hidden_size,))
    b_hh = u(ks[3], (4 * hidden_size,))
    # nn.Linear(hidden_size, 1)
    fc_w = u(ks[4], (1, hidden_size))
    fc_b = u(ks[5], (1,))

    x = jax.random.normal(ks[6], (B, T, input_size), jnp.float32)

    y = lstm_forward(x, w_ih, w_hh, b_ih, b_hh, fc_w, fc_b)
    jax.block_until_ready(y)

    y_ref = lstm_reference(x, w_ih, w_hh, b_ih, b_hh, fc_w, fc_b)
    assert y.shape == (B,)
    # sigmoid-as-tanh reformulation differs from the reference only at ULP level
    assert jnp.allclose(y, y_ref, atol=1e-4, rtol=1e-4), (y, y_ref)

    print("KERNEL_OK")
</pallas_src>

<mosaic_0001>
module attributes {stable_mosaic.version = 11 : i64} {
  func.func @_lstm_kernel(%arg0: memref<8x4x1xf32, #tpu.memory_space<vmem>>, %arg1: memref<1x512xf32, #tpu.memory_space<vmem>>, %arg2: memref<10x512xf32, #tpu.memory_space<vmem>>, %arg3: memref<1x512xf32, #tpu.memory_space<vmem>>, %arg4: memref<128x1xf32, #tpu.memory_space<vmem>>, %arg5: memref<1x1xf32, #tpu.memory_space<vmem>>, %arg6: memref<4x1xf32, #tpu.memory_space<vmem>>) attributes {dimension_semantics = [], scalar_prefetch = 0 : i64, scratch_operands = 0 : i64, tpu.core_type = #tpu.core_type<tc>} {
    %c0 = arith.constant 0 : index
    %c0_0 = arith.constant 0 : index
    %0 = vector.load %arg1[%c0, %c0_0] : memref<1x512xf32, #tpu.memory_space<vmem>>, vector<1x512xf32>
    %c0_1 = arith.constant 0 : index
    %c0_2 = arith.constant 0 : index
    %1 = vector.load %arg2[%c0_1, %c0_2] : memref<10x512xf32, #tpu.memory_space<vmem>>, vector<10x512xf32>
    %c0_3 = arith.constant 0 : index
    %c0_4 = arith.constant 0 : index
    %2 = vector.load %arg3[%c0_3, %c0_4] : memref<1x512xf32, #tpu.memory_space<vmem>>, vector<1x512xf32>
    %c0_5 = arith.constant 0 : index
    %c0_6 = arith.constant 0 : index
    %c0_7 = arith.constant 0 : index
    %3 = vector.load %arg0[%c0_5, %c0_6, %c0_7] : memref<8x4x1xf32, #tpu.memory_space<vmem>>, vector<8x4x1xf32>
    %4 = vector.shape_cast %0 : vector<1x512xf32> to vector<1x1x512xf32>
    %5 = vector.broadcast %3 : vector<8x4x1xf32> to vector<8x4x512xf32>
    %6 = vector.broadcast %4 : vector<1x1x512xf32> to vector<8x4x512xf32>
    %7 = arith.mulf %5, %6 : vector<8x4x512xf32>
    %8 = vector.shape_cast %2 : vector<1x512xf32> to vector<1x1x512xf32>
    %9 = vector.broadcast %8 : vector<1x1x512xf32> to vector<8x4x512xf32>
    %10 = arith.addf %7, %9 : vector<8x4x512xf32>
    %cst = arith.constant 0.000000e+00 : f32
    %11 = vector.broadcast %cst : f32 to vector<4x128xf32>
    %cst_8 = arith.constant 0.000000e+00 : f32
    %12 = vector.broadcast %cst_8 : f32 to vector<4x128xf32>
    %13 = vector.extract_strided_slice %10 {offsets = [0, 0, 0], sizes = [1, 4, 512], strides = [1, 1, 1]} : vector<8x4x512xf32> to vector<1x4x512xf32>
    %14 = vector.shape_cast %13 : vector<1x4x512xf32> to vector<4x512xf32>
    %15 = vector.extract_strided_slice %11 {offsets = [0, 0], sizes = [4, 10], strides = [1, 1]} : vector<4x128xf32> to vector<4x10xf32>
    %cst_9 = arith.constant dense<0.000000e+00> : vector<4x512xf32>
    %16 = tpu.matmul %15, %1, %cst_9 {dimension_numbers = #tpu.dot_dimension_numbers<[1], [0], [0], [1], [0, 0, 1, 1], [], []>} : vector<4x10xf32>, vector<10x512xf32>, vector<4x512xf32> -> vector<4x512xf32>
    %17 = arith.addf %14, %16 : vector<4x512xf32>
    %18 = math.tanh %17 : vector<4x512xf32>
    %19 = vector.extract_strided_slice %18 {offsets = [0, 0], sizes = [4, 128], strides = [1, 1]} : vector<4x512xf32> to vector<4x128xf32>
    %cst_10 = arith.constant 1.000000e+00 : f32
    %20 = vector.broadcast %cst_10 : f32 to vector<4x128xf32>
    %21 = arith.addf %19, %20 : vector<4x128xf32>
    %cst_11 = arith.constant 5.000000e-01 : f32
    %22 = vector.broadcast %cst_11 : f32 to vector<4x128xf32>
    %23 = arith.mulf %22, %21 : vector<4x128xf32>
    %24 = vector.extract_strided_slice %18 {offsets = [0, 128], sizes = [4, 128], strides = [1, 1]} : vector<4x512xf32> to vector<4x128xf32>
    %cst_12 = arith.constant 1.000000e+00 : f32
    %25 = vector.broadcast %cst_12 : f32 to vector<4x128xf32>
    %26 = arith.addf %24, %25 : vector<4x128xf32>
    %cst_13 = arith.constant 5.000000e-01 : f32
    %27 = vector.broadcast %cst_13 : f32 to vector<4x128xf32>
    %28 = arith.mulf %27, %26 : vector<4x128xf32>
    %29 = vector.extract_strided_slice %18 {offsets = [0, 256], sizes = [4, 128], strides = [1, 1]} : vector<4x512xf32> to vector<4x128xf32>
    %30 = vector.extract_strided_slice %18 {offsets = [0, 384], sizes = [4, 128], strides = [1, 1]} : vector<4x512xf32> to vector<4x128xf32>
    %cst_14 = arith.constant 1.000000e+00 : f32
    %31 = vector.broadcast %cst_14 : f32 to vector<4x128xf32>
    %32 = arith.addf %30, %31 : vector<4x128xf32>
    %cst_15 = arith.constant 5.000000e-01 : f32
    %33 = vector.broadcast %cst_15 : f32 to vector<4x128xf32>
    %34 = arith.mulf %33, %32 : vector<4x128xf32>
    %35 = arith.mulf %28, %12 : vector<4x128xf32>
    %36 = arith.mulf %23, %29 : vector<4x128xf32>
    %37 = arith.addf %35, %36 : vector<4x128xf32>
    %38 = math.tanh %37 : vector<4x128xf32>
    %39 = arith.mulf %34, %38 : vector<4x128xf32>
    %40 = vector.extract_strided_slice %10 {offsets = [1, 0, 0], sizes = [1, 4, 512], strides = [1, 1, 1]} : vector<8x4x512xf32> to vector<1x4x512xf32>
    %41 = vector.shape_cast %40 : vector<1x4x512xf32> to vector<4x512xf32>
    %42 = vector.extract_strided_slice %39 {offsets = [0, 0], sizes = [4, 10], strides = [1, 1]} : vector<4x128xf32> to vector<4x10xf32>
    %cst_16 = arith.constant dense<0.000000e+00> : vector<4x512xf32>
    %43 = tpu.matmul %42, %1, %cst_16 {dimension_numbers = #tpu.dot_dimension_numbers<[1], [0], [0], [1], [0, 0, 1, 1], [], []>} : vector<4x10xf32>, vector<10x512xf32>, vector<4x512xf32> -> vector<4x512xf32>
    %44 = arith.addf %41, %43 : vector<4x512xf32>
    %45 = math.tanh %44 : vector<4x512xf32>
    %46 = vector.extract_strided_slice %45 {offsets = [0, 0], sizes = [4, 128], strides = [1, 1]} : vector<4x512xf32> to vector<4x128xf32>
    %cst_17 = arith.constant 1.000000e+00 : f32
    %47 = vector.broadcast %cst_17 : f32 to vector<4x128xf32>
    %48 = arith.addf %46, %47 : vector<4x128xf32>
    %cst_18 = arith.constant 5.000000e-01 : f32
    %49 = vector.broadcast %cst_18 : f32 to vector<4x128xf32>
    %50 = arith.mulf %49, %48 : vector<4x128xf32>
    %51 = vector.extract_strided_slice %45 {offsets = [0, 128], sizes = [4, 128], strides = [1, 1]} : vector<4x512xf32> to vector<4x128xf32>
    %cst_19 = arith.constant 1.000000e+00 : f32
    %52 = vector.broadcast %cst_19 : f32 to vector<4x128xf32>
    %53 = arith.addf %51, %52 : vector<4x128xf32>
    %cst_20 = arith.constant 5.000000e-01 : f32
    %54 = vector.broadcast %cst_20 : f32 to vector<4x128xf32>
    %55 = arith.mulf %54, %53 : vector<4x128xf32>
    %56 = vector.extract_strided_slice %45 {offsets = [0, 256], sizes = [4, 128], strides = [1, 1]} : vector<4x512xf32> to vector<4x128xf32>
    %57 = vector.extract_strided_slice %45 {offsets = [0, 384], sizes = [4, 128], strides = [1, 1]} : vector<4x512xf32> to vector<4x128xf32>
    %cst_21 = arith.constant 1.000000e+00 : f32
    %58 = vector.broadcast %cst_21 : f32 to vector<4x128xf32>
    %59 = arith.addf %57, %58 : vector<4x128xf32>
    %cst_22 = arith.constant 5.000000e-01 : f32
    %60 = vector.broadcast %cst_22 : f32 to vector<4x128xf32>
    %61 = arith.mulf %60, %59 : vector<4x128xf32>
    %62 = arith.mulf %55, %37 : vector<4x128xf32>
    %63 = arith.mulf %50, %56 : vector<4x128xf32>
    %64 = arith.addf %62, %63 : vector<4x128xf32>
    %65 = math.tanh %64 : vector<4x128xf32>
    %66 = arith.mulf %61, %65 : vector<4x128xf32>
    %67 = vector.extract_strided_slice %10 {offsets = [2, 0, 0], sizes = [1, 4, 512], strides = [1, 1, 1]} : vector<8x4x512xf32> to vector<1x4x512xf32>
    %68 = vector.shape_cast %67 : vector<1x4x512xf32> to vector<4x512xf32>
    %69 = vector.extract_strided_slice %66 {offsets = [0, 0], sizes = [4, 10], strides = [1, 1]} : vector<4x128xf32> to vector<4x10xf32>
    %cst_23 = arith.constant dense<0.000000e+00> : vector<4x512xf32>
    %70 = tpu.matmul %69, %1, %cst_23 {dimension_numbers = #tpu.dot_dimension_numbers<[1], [0], [0], [1], [0, 0, 1, 1], [], []>} : vector<4x10xf32>, vector<10x512xf32>, vector<4x512xf32> -> vector<4x512xf32>
    %71 = arith.addf %68, %70 : vector<4x512xf32>
    %72 = math.tanh %71 : vector<4x512xf32>
    %73 = vector.extract_strided_slice %72 {offsets = [0, 0], sizes = [4, 128], strides = [1, 1]} : vector<4x512xf32> to vector<4x128xf32>
    %cst_24 = arith.constant 1.000000e+00 : f32
    %74 = vector.broadcast %cst_24 : f32 to vector<4x128xf32>
    %75 = arith.addf %73, %74 : vector<4x128xf32>
    %cst_25 = arith.constant 5.000000e-01 : f32
    %76 = vector.broadcast %cst_25 : f32 to vector<4x128xf32>
    %77 = arith.mulf %76, %75 : vector<4x128xf32>
    %78 = vector.extract_strided_slice %72 {offsets = [0, 128], sizes = [4, 128], strides = [1, 1]} : vector<4x512xf32> to vector<4x128xf32>
    %cst_26 = arith.constant 1.000000e+00 : f32
    %79 = vector.broadcast %cst_26 : f32 to vector<4x128xf32>
    %80 = arith.addf %78, %79 : vector<4x128xf32>
    %cst_27 = arith.constant 5.000000e-01 : f32
    %81 = vector.broadcast %cst_27 : f32 to vector<4x128xf32>
    %82 = arith.mulf %81, %80 : vector<4x128xf32>
    %83 = vector.extract_strided_slice %72 {offsets = [0, 256], sizes = [4, 128], strides = [1, 1]} : vector<4x512xf32> to vector<4x128xf32>
    %84 = vector.extract_strided_slice %72 {offsets = [0, 384], sizes = [4, 128], strides = [1, 1]} : vector<4x512xf32> to vector<4x128xf32>
    %cst_28 = arith.constant 1.000000e+00 : f32
    %85 = vector.broadcast %cst_28 : f32 to vector<4x128xf32>
    %86 = arith.addf %84, %85 : vector<4x128xf32>
    %cst_29 = arith.constant 5.000000e-01 : f32
    %87 = vector.broadcast %cst_29 : f32 to vector<4x128xf32>
    %88 = arith.mulf %87, %86 : vector<4x128xf32>
    %89 = arith.mulf %82, %64 : vector<4x128xf32>
    %90 = arith.mulf %77, %83 : vector<4x128xf32>
    %91 = arith.addf %89, %90 : vector<4x128xf32>
    %92 = math.tanh %91 : vector<4x128xf32>
    %93 = arith.mulf %88, %92 : vector<4x128xf32>
    %94 = vector.extract_strided_slice %10 {offsets = [3, 0, 0], sizes = [1, 4, 512], strides = [1, 1, 1]} : vector<8x4x512xf32> to vector<1x4x512xf32>
    %95 = vector.shape_cast %94 : vector<1x4x512xf32> to vector<4x512xf32>
    %96 = vector.extract_strided_slice %93 {offsets = [0, 0], sizes = [4, 10], strides = [1, 1]} : vector<4x128xf32> to vector<4x10xf32>
    %cst_30 = arith.constant dense<0.000000e+00> : vector<4x512xf32>
    %97 = tpu.matmul %96, %1, %cst_30 {dimension_numbers = #tpu.dot_dimension_numbers<[1], [0], [0], [1], [0, 0, 1, 1], [], []>} : vector<4x10xf32>, vector<10x512xf32>, vector<4x512xf32> -> vector<4x512xf32>
    %98 = arith.addf %95, %97 : vector<4x512xf32>
    %99 = math.tanh %98 : vector<4x512xf32>
    %100 = vector.extract_strided_slice %99 {offsets = [0, 0], sizes = [4, 128], strides = [1, 1]} : vector<4x512xf32> to vector<4x128xf32>
    %cst_31 = arith.constant 1.000000e+00 : f32
    %101 = vector.broadcast %cst_31 : f32 to vector<4x128xf32>
    %102 = arith.addf %100, %101 : vector<4x128xf32>
    %cst_32 = arith.constant 5.000000e-01 : f32
    %103 = vector.broadcast %cst_32 : f32 to vector<4x128xf32>
    %104 = arith.mulf %103, %102 : vector<4x128xf32>
    %105 = vector.extract_strided_slice %99 {offsets = [0, 128], sizes = [4, 128], strides = [1, 1]} : vector<4x512xf32> to vector<4x128xf32>
    %cst_33 = arith.constant 1.000000e+00 : f32
    %106 = vector.broadcast %cst_33 : f32 to vector<4x128xf32>
    %107 = arith.addf %105, %106 : vector<4x128xf32>
    %cst_34 = arith.constant 5.000000e-01 : f32
    %108 = vector.broadcast %cst_34 : f32 to vector<4x128xf32>
    %109 = arith.mulf %108, %107 : vector<4x128xf32>
    %110 = vector.extract_strided_slice %99 {offsets = [0, 256], sizes = [4, 128], strides = [1, 1]} : vector<4x512xf32> to vector<4x128xf32>
    %111 = vector.extract_strided_slice %99 {offsets = [0, 384], sizes = [4, 128], strides = [1, 1]} : vector<4x512xf32> to vector<4x128xf32>
    %cst_35 = arith.constant 1.000000e+00 : f32
    %112 = vector.broadcast %cst_35 : f32 to vector<4x128xf32>
    %113 = arith.addf %111, %112 : vector<4x128xf32>
    %cst_36 = arith.constant 5.000000e-01 : f32
    %114 = vector.broadcast %cst_36 : f32 to vector<4x128xf32>
    %115 = arith.mulf %114, %113 : vector<4x128xf32>
    %116 = arith.mulf %109, %91 : vector<4x128xf32>
    %117 = arith.mulf %104, %110 : vector<4x128xf32>
    %118 = arith.addf %116, %117 : vector<4x128xf32>
    %119 = math.tanh %118 : vector<4x128xf32>
    %120 = arith.mulf %115, %119 : vector<4x128xf32>
    %121 = vector.extract_strided_slice %10 {offsets = [4, 0, 0], sizes = [1, 4, 512], strides = [1, 1, 1]} : vector<8x4x512xf32> to vector<1x4x512xf32>
    %122 = vector.shape_cast %121 : vector<1x4x512xf32> to vector<4x512xf32>
    %123 = vector.extract_strided_slice %120 {offsets = [0, 0], sizes = [4, 10], strides = [1, 1]} : vector<4x128xf32> to vector<4x10xf32>
    %cst_37 = arith.constant dense<0.000000e+00> : vector<4x512xf32>
    %124 = tpu.matmul %123, %1, %cst_37 {dimension_numbers = #tpu.dot_dimension_numbers<[1], [0], [0], [1], [0, 0, 1, 1], [], []>} : vector<4x10xf32>, vector<10x512xf32>, vector<4x512xf32> -> vector<4x512xf32>
    %125 = arith.addf %122, %124 : vector<4x512xf32>
    %126 = math.tanh %125 : vector<4x512xf32>
    %127 = vector.extract_strided_slice %126 {offsets = [0, 0], sizes = [4, 128], strides = [1, 1]} : vector<4x512xf32> to vector<4x128xf32>
    %cst_38 = arith.constant 1.000000e+00 : f32
    %128 = vector.broadcast %cst_38 : f32 to vector<4x128xf32>
    %129 = arith.addf %127, %128 : vector<4x128xf32>
    %cst_39 = arith.constant 5.000000e-01 : f32
    %130 = vector.broadcast %cst_39 : f32 to vector<4x128xf32>
    %131 = arith.mulf %130, %129 : vector<4x128xf32>
    %132 = vector.extract_strided_slice %126 {offsets = [0, 128], sizes = [4, 128], strides = [1, 1]} : vector<4x512xf32> to vector<4x128xf32>
    %cst_40 = arith.constant 1.000000e+00 : f32
    %133 = vector.broadcast %cst_40 : f32 to vector<4x128xf32>
    %134 = arith.addf %132, %133 : vector<4x128xf32>
    %cst_41 = arith.constant 5.000000e-01 : f32
    %135 = vector.broadcast %cst_41 : f32 to vector<4x128xf32>
    %136 = arith.mulf %135, %134 : vector<4x128xf32>
    %137 = vector.extract_strided_slice %126 {offsets = [0, 256], sizes = [4, 128], strides = [1, 1]} : vector<4x512xf32> to vector<4x128xf32>
    %138 = vector.extract_strided_slice %126 {offsets = [0, 384], sizes = [4, 128], strides = [1, 1]} : vector<4x512xf32> to vector<4x128xf32>
    %cst_42 = arith.constant 1.000000e+00 : f32
    %139 = vector.broadcast %cst_42 : f32 to vector<4x128xf32>
    %140 = arith.addf %138, %139 : vector<4x128xf32>
    %cst_43 = arith.constant 5.000000e-01 : f32
    %141 = vector.broadcast %cst_43 : f32 to vector<4x128xf32>
    %142 = arith.mulf %141, %140 : vector<4x128xf32>
    %143 = arith.mulf %136, %118 : vector<4x128xf32>
    %144 = arith.mulf %131, %137 : vector<4x128xf32>
    %145 = arith.addf %143, %144 : vector<4x128xf32>
    %146 = math.tanh %145 : vector<4x128xf32>
    %147 = arith.mulf %142, %146 : vector<4x128xf32>
    %148 = vector.extract_strided_slice %10 {offsets = [5, 0, 0], sizes = [1, 4, 512], strides = [1, 1, 1]} : vector<8x4x512xf32> to vector<1x4x512xf32>
    %149 = vector.shape_cast %148 : vector<1x4x512xf32> to vector<4x512xf32>
    %150 = vector.extract_strided_slice %147 {offsets = [0, 0], sizes = [4, 10], strides = [1, 1]} : vector<4x128xf32> to vector<4x10xf32>
    %cst_44 = arith.constant dense<0.000000e+00> : vector<4x512xf32>
    %151 = tpu.matmul %150, %1, %cst_44 {dimension_numbers = #tpu.dot_dimension_numbers<[1], [0], [0], [1], [0, 0, 1, 1], [], []>} : vector<4x10xf32>, vector<10x512xf32>, vector<4x512xf32> -> vector<4x512xf32>
    %152 = arith.addf %149, %151 : vector<4x512xf32>
    %153 = math.tanh %152 : vector<4x512xf32>
    %154 = vector.extract_strided_slice %153 {offsets = [0, 0], sizes = [4, 128], strides = [1, 1]} : vector<4x512xf32> to vector<4x128xf32>
    %cst_45 = arith.constant 1.000000e+00 : f32
    %155 = vector.broadcast %cst_45 : f32 to vector<4x128xf32>
    %156 = arith.addf %154, %155 : vector<4x128xf32>
    %cst_46 = arith.constant 5.000000e-01 : f32
    %157 = vector.broadcast %cst_46 : f32 to vector<4x128xf32>
    %158 = arith.mulf %157, %156 : vector<4x128xf32>
    %159 = vector.extract_strided_slice %153 {offsets = [0, 128], sizes = [4, 128], strides = [1, 1]} : vector<4x512xf32> to vector<4x128xf32>
    %cst_47 = arith.constant 1.000000e+00 : f32
    %160 = vector.broadcast %cst_47 : f32 to vector<4x128xf32>
    %161 = arith.addf %159, %160 : vector<4x128xf32>
    %cst_48 = arith.constant 5.000000e-01 : f32
    %162 = vector.broadcast %cst_48 : f32 to vector<4x128xf32>
    %163 = arith.mulf %162, %161 : vector<4x128xf32>
    %164 = vector.extract_strided_slice %153 {offsets = [0, 256], sizes = [4, 128], strides = [1, 1]} : vector<4x512xf32> to vector<4x128xf32>
    %165 = vector.extract_strided_slice %153 {offsets = [0, 384], sizes = [4, 128], strides = [1, 1]} : vector<4x512xf32> to vector<4x128xf32>
    %cst_49 = arith.constant 1.000000e+00 : f32
    %166 = vector.broadcast %cst_49 : f32 to vector<4x128xf32>
    %167 = arith.addf %165, %166 : vector<4x128xf32>
    %cst_50 = arith.constant 5.000000e-01 : f32
    %168 = vector.broadcast %cst_50 : f32 to vector<4x128xf32>
    %169 = arith.mulf %168, %167 : vector<4x128xf32>
    %170 = arith.mulf %163, %145 : vector<4x128xf32>
    %171 = arith.mulf %158, %164 : vector<4x128xf32>
    %172 = arith.addf %170, %171 : vector<4x128xf32>
    %173 = math.tanh %172 : vector<4x128xf32>
    %174 = arith.mulf %169, %173 : vector<4x128xf32>
    %175 = vector.extract_strided_slice %10 {offsets = [6, 0, 0], sizes = [1, 4, 512], strides = [1, 1, 1]} : vector<8x4x512xf32> to vector<1x4x512xf32>
    %176 = vector.shape_cast %175 : vector<1x4x512xf32> to vector<4x512xf32>
    %177 = vector.extract_strided_slice %174 {offsets = [0, 0], sizes = [4, 10], strides = [1, 1]} : vector<4x128xf32> to vector<4x10xf32>
    %cst_51 = arith.constant dense<0.000000e+00> : vector<4x512xf32>
    %178 = tpu.matmul %177, %1, %cst_51 {dimension_numbers = #tpu.dot_dimension_numbers<[1], [0], [0], [1], [0, 0, 1, 1], [], []>} : vector<4x10xf32>, vector<10x512xf32>, vector<4x512xf32> -> vector<4x512xf32>
    %179 = arith.addf %176, %178 : vector<4x512xf32>
    %180 = math.tanh %179 : vector<4x512xf32>
    %181 = vector.extract_strided_slice %180 {offsets = [0, 0], sizes = [4, 128], strides = [1, 1]} : vector<4x512xf32> to vector<4x128xf32>
    %cst_52 = arith.constant 1.000000e+00 : f32
    %182 = vector.broadcast %cst_52 : f32 to vector<4x128xf32>
    %183 = arith.addf %181, %182 : vector<4x128xf32>
    %cst_53 = arith.constant 5.000000e-01 : f32
    %184 = vector.broadcast %cst_53 : f32 to vector<4x128xf32>
    %185 = arith.mulf %184, %183 : vector<4x128xf32>
    %186 = vector.extract_strided_slice %180 {offsets = [0, 128], sizes = [4, 128], strides = [1, 1]} : vector<4x512xf32> to vector<4x128xf32>
    %cst_54 = arith.constant 1.000000e+00 : f32
    %187 = vector.broadcast %cst_54 : f32 to vector<4x128xf32>
    %188 = arith.addf %186, %187 : vector<4x128xf32>
    %cst_55 = arith.constant 5.000000e-01 : f32
    %189 = vector.broadcast %cst_55 : f32 to vector<4x128xf32>
    %190 = arith.mulf %189, %188 : vector<4x128xf32>
    %191 = vector.extract_strided_slice %180 {offsets = [0, 256], sizes = [4, 128], strides = [1, 1]} : vector<4x512xf32> to vector<4x128xf32>
    %192 = vector.extract_strided_slice %180 {offsets = [0, 384], sizes = [4, 128], strides = [1, 1]} : vector<4x512xf32> to vector<4x128xf32>
    %cst_56 = arith.constant 1.000000e+00 : f32
    %193 = vector.broadcast %cst_56 : f32 to vector<4x128xf32>
    %194 = arith.addf %192, %193 : vector<4x128xf32>
    %cst_57 = arith.constant 5.000000e-01 : f32
    %195 = vector.broadcast %cst_57 : f32 to vector<4x128xf32>
    %196 = arith.mulf %195, %194 : vector<4x128xf32>
    %197 = arith.mulf %190, %172 : vector<4x128xf32>
    %198 = arith.mulf %185, %191 : vector<4x128xf32>
    %199 = arith.addf %197, %198 : vector<4x128xf32>
    %200 = math.tanh %199 : vector<4x128xf32>
    %201 = arith.mulf %196, %200 : vector<4x128xf32>
    %202 = vector.extract_strided_slice %10 {offsets = [7, 0, 0], sizes = [1, 4, 512], strides = [1, 1, 1]} : vector<8x4x512xf32> to vector<1x4x512xf32>
    %203 = vector.shape_cast %202 : vector<1x4x512xf32> to vector<4x512xf32>
    %204 = vector.extract_strided_slice %201 {offsets = [0, 0], sizes = [4, 10], strides = [1, 1]} : vector<4x128xf32> to vector<4x10xf32>
    %cst_58 = arith.constant dense<0.000000e+00> : vector<4x512xf32>
    %205 = tpu.matmul %204, %1, %cst_58 {dimension_numbers = #tpu.dot_dimension_numbers<[1], [0], [0], [1], [0, 0, 1, 1], [], []>} : vector<4x10xf32>, vector<10x512xf32>, vector<4x512xf32> -> vector<4x512xf32>
    %206 = arith.addf %203, %205 : vector<4x512xf32>
    %207 = math.tanh %206 : vector<4x512xf32>
    %208 = vector.extract_strided_slice %207 {offsets = [0, 0], sizes = [4, 128], strides = [1, 1]} : vector<4x512xf32> to vector<4x128xf32>
    %cst_59 = arith.constant 1.000000e+00 : f32
    %209 = vector.broadcast %cst_59 : f32 to vector<4x128xf32>
    %210 = arith.addf %208, %209 : vector<4x128xf32>
    %cst_60 = arith.constant 5.000000e-01 : f32
    %211 = vector.broadcast %cst_60 : f32 to vector<4x128xf32>
    %212 = arith.mulf %211, %210 : vector<4x128xf32>
    %213 = vector.extract_strided_slice %207 {offsets = [0, 128], sizes = [4, 128], strides = [1, 1]} : vector<4x512xf32> to vector<4x128xf32>
    %cst_61 = arith.constant 1.000000e+00 : f32
    %214 = vector.broadcast %cst_61 : f32 to vector<4x128xf32>
    %215 = arith.addf %213, %214 : vector<4x128xf32>
    %cst_62 = arith.constant 5.000000e-01 : f32
    %216 = vector.broadcast %cst_62 : f32 to vector<4x128xf32>
    %217 = arith.mulf %216, %215 : vector<4x128xf32>
    %218 = vector.extract_strided_slice %207 {offsets = [0, 256], sizes = [4, 128], strides = [1, 1]} : vector<4x512xf32> to vector<4x128xf32>
    %219 = vector.extract_strided_slice %207 {offsets = [0, 384], sizes = [4, 128], strides = [1, 1]} : vector<4x512xf32> to vector<4x128xf32>
    %cst_63 = arith.constant 1.000000e+00 : f32
    %220 = vector.broadcast %cst_63 : f32 to vector<4x128xf32>
    %221 = arith.addf %219, %220 : vector<4x128xf32>
    %cst_64 = arith.constant 5.000000e-01 : f32
    %222 = vector.broadcast %cst_64 : f32 to vector<4x128xf32>
    %223 = arith.mulf %222, %221 : vector<4x128xf32>
    %224 = arith.mulf %217, %199 : vector<4x128xf32>
    %225 = arith.mulf %212, %218 : vector<4x128xf32>
    %226 = arith.addf %224, %225 : vector<4x128xf32>
    %227 = math.tanh %226 : vector<4x128xf32>
    %228 = arith.mulf %223, %227 : vector<4x128xf32>
    %c0_65 = arith.constant 0 : index
    %c0_66 = arith.constant 0 : index
    %229 = vector.load %arg4[%c0_65, %c0_66] : memref<128x1xf32, #tpu.memory_space<vmem>>, vector<128x1xf32>
    %cst_67 = arith.constant dense<0.000000e+00> : vector<4x1xf32>
    %230 = tpu.matmul %228, %229, %cst_67 {dimension_numbers = #tpu.dot_dimension_numbers<[1], [0], [0], [1], [0, 0, 1, 1], [], []>} : vector<4x128xf32>, vector<128x1xf32>, vector<4x1xf32> -> vector<4x1xf32>
    %c0_68 = arith.constant 0 : index
    %c0_69 = arith.constant 0 : index
    %231 = vector.load %arg5[%c0_68, %c0_69] : memref<1x1xf32, #tpu.memory_space<vmem>>, vector<1x1xf32>
    %232 = vector.broadcast %231 : vector<1x1xf32> to vector<4x1xf32>
    %233 = arith.addf %230, %232 : vector<4x1xf32>
    %c0_70 = arith.constant 0 : index
    %c0_71 = arith.constant 0 : index
    %234 = vector.load %arg6[%c0_70, %c0_71] : memref<4x1xf32, #tpu.memory_space<vmem>>, vector<4x1xf32>
    tpu.vector_store %arg6[%c0_70, %c0_71], %233 {strides = array<i32>} : memref<4x1xf32, #tpu.memory_space<vmem>>, vector<4x1xf32>,
    return
  }
}

</mosaic_0001>

<llo_original>
// kernel: tpu_custom_call.1
$region0: #{tpu_custom_call.1}
  #allocation0 [shape = 'u32[]', space=smem, size = 0x4, offset = 0x4, fixed_abs, tag = 'smem constant byte address 0x4 - core index']
  #allocation1 [shape = 'u32[144,128]{1,0:T(1,128)}', space=vmem, size = 0x12000, scoped, tag = 'internal scratch']
  #allocation2 [shape = 'f32[1,1]{1,0:T(1,128)S(1)}', space=vmem, size = 0x200, scoped, tag = 'scoped memory for tpu_custom_call.1']
  %s0 = inlined_call_operand.vmem [shape: f32[8,4,1], index: 0, kind: input, shape index: {}]
  %s1 = inlined_call_operand.vmem [shape: f32[1,512], index: 1, kind: input, shape index: {}]
  %s2 = inlined_call_operand.vmem [shape: f32[10,512], index: 2, kind: input, shape index: {}]
  %s3 = inlined_call_operand.vmem [shape: f32[1,512], index: 3, kind: input, shape index: {}]
  %s4 = inlined_call_operand.vmem [shape: f32[128,1], index: 4, kind: input, shape index: {}]
  %s5 = inlined_call_operand.<no memory space> [shape: f32[1,1], index: 5, kind: input, shape index: {}]
  %s6 = inlined_call_operand.vmem [shape: f32[4,1], index: 6, kind: output, shape index: {}]
  %s7 = sld [smem:[#allocation0]]
  $region34: #{tpu_custom_call.1} parent=0
    _
  %s9 = ssub.s32 1, %s7
  %s10 = scalar_select 0, %s9, %s7
  %v11 = vstv %s5
  %12 = vst [vmem:[#allocation2] sm:$0x1] %v11
  // Predicated region
  $region2: #{tpu_custom_call.1} parent=0 // pred_check
    _
  $region3: #{tpu_custom_call.1} parent=0 // pred_check_branch
    %14 = sbr.rel (0) target = $region5
  $region4: #{tpu_custom_call.1} parent=0 // pred_region
    _
  $region5: #{tpu_custom_call.1} parent=0 // pred_fallthru
    _
  // Predicated region
  $region6: #{tpu_custom_call.1} parent=0 // pred_check
    _
  $region7: #{tpu_custom_call.1} parent=0 // pred_check_branch
    %16 = sbr.rel (0) target = $region9
  $region8: #{tpu_custom_call.1} parent=0 // pred_region
    _
  $region9: #{tpu_custom_call.1} parent=0 // pred_fallthru
    _
  // Predicated region
  $region10: #{tpu_custom_call.1} parent=0 // pred_check
    _
  $region11: #{tpu_custom_call.1} parent=0 // pred_check_branch
    %18 = sbr.rel (0) target = $region13
  $region12: #{tpu_custom_call.1} parent=0 // pred_region
    _
  $region13: #{tpu_custom_call.1} parent=0 // pred_fallthru
    _
  // Predicated region
  $region14: #{tpu_custom_call.1} parent=0 // pred_check
    _
  $region15: #{tpu_custom_call.1} parent=0 // pred_check_branch
    %20 = sbr.rel (0) target = $region17
  $region16: #{tpu_custom_call.1} parent=0 // pred_region
    _
  $region17: #{tpu_custom_call.1} parent=0 // pred_fallthru
    _
  // Predicated region
  $region18: #{tpu_custom_call.1} parent=0 // pred_check
    _
  $region19: #{tpu_custom_call.1} parent=0 // pred_check_branch
    %22 = sbr.rel (0) target = $region21
  $region20: #{tpu_custom_call.1} parent=0 // pred_region
    _
  $region21: #{tpu_custom_call.1} parent=0 // pred_fallthru
    _
  // Predicated region
  $region22: #{tpu_custom_call.1} parent=0 // pred_check
    _
  $region23: #{tpu_custom_call.1} parent=0 // pred_check_branch
    %24 = sbr.rel (0) target = $region25
  $region24: #{tpu_custom_call.1} parent=0 // pred_region
    _
  $region25: #{tpu_custom_call.1} parent=0 // pred_fallthru
    _
  %v25 = vld [vmem:[%s1] sm:$0xf]
  %v26 = vld [vmem:[%s2] sm:$0xff]
  %v27 = vld [vmem:[%s2 + $0x8] sm:$0xff]
  %v28 = vld [vmem:[%s2 + $0x10] sm:$0xff]
  %v29 = vld [vmem:[%s2 + $0x18] sm:$0xff]
  %v30 = vld [vmem:[%s2 + $0x20] sm:$0x3]
  %v31 = vld [vmem:[%s2 + $0x28] sm:$0x3]
  %v32 = vld [vmem:[%s2 + $0x30] sm:$0x3]
  %v33 = vld [vmem:[%s2 + $0x38] sm:$0x3]
  %v34 = vld [vmem:[%s3] sm:$0xf]
  %v35 = vld [vmem:[%s0] sm:$0xf]
  %v36 = vld [vmem:[%s0 + $0x4] sm:$0xf]
  %v37 = vld [vmem:[%s0 + $0x8] sm:$0xf]
  %v38 = vld [vmem:[%s0 + $0xc] sm:$0xf]
  %v39 = vld [vmem:[%s0 + $0x10] sm:$0xf]
  %v40 = vld [vmem:[%s0 + $0x14] sm:$0xf]
  %v41 = vld [vmem:[%s0 + $0x18] sm:$0xf]
  %v42 = vld [vmem:[%s0 + $0x1c] sm:$0xf]
  %44 = vset.pattern.permute.xlu0 0
  %45 = vperm.xlu0 %44, %v35
  %v46 = vpop.permute.xlu0 %45
  %49 = vset.pattern.permute.xlu0 0
  %50 = vperm.xlu0 %49, %v36
  %v51 = vpop.permute.xlu0 %50
  %54 = vset.pattern.permute.xlu0 0
  %55 = vperm.xlu0 %54, %v37
  %v56 = vpop.permute.xlu0 %55
  %59 = vset.pattern.permute.xlu0 0
  %60 = vperm.xlu0 %59, %v38
  %v61 = vpop.permute.xlu0 %60
  %64 = vset.pattern.permute.xlu0 0
  %65 = vperm.xlu0 %64, %v39
  %v66 = vpop.permute.xlu0 %65
  %69 = vset.pattern.permute.xlu0 0
  %70 = vperm.xlu0 %69, %v40
  %v71 = vpop.permute.xlu0 %70
  %74 = vset.pattern.permute.xlu0 0
  %75 = vperm.xlu0 %74, %v41
  %v76 = vpop.permute.xlu0 %75
  %79 = vset.pattern.permute.xlu0 0
  %80 = vperm.xlu0 %79, %v42
  %v81 = vpop.permute.xlu0 %80
  %v84 = vlaneseq
  %v85 = vshrl.u32 %v84, 7
  %v86 = vsub.s32 0, %v85
  %v87 = vrot.slane %v25, %v86
  %v88 = vlaneseq
  %v89 = vshrl.u32 %v88, 7
  %v90 = vsub.s32 1, %v89
  %v91 = vrot.slane %v25, %v90
  %v92 = vlaneseq
  %v93 = vshrl.u32 %v92, 7
  %v94 = vsub.s32 2, %v93
  %v95 = vrot.slane %v25, %v94
  %v96 = vlaneseq
  %v97 = vshrl.u32 %v96, 7
  %v98 = vsub.s32 3, %v97
  %v99 = vrot.slane %v25, %v98
  %v104 = vmul.f32 %v46, %v87
  %v105 = vmul.f32 %v46, %v91
  %v106 = vmul.f32 %v46, %v95
  %v107 = vmul.f32 %v46, %v99
  %v108 = vmul.f32 %v51, %v87
  %v109 = vmul.f32 %v51, %v91
  %v110 = vmul.f32 %v51, %v95
  %v111 = vmul.f32 %v51, %v99
  %v112 = vmul.f32 %v56, %v87
  %v113 = vmul.f32 %v56, %v91
  %v114 = vmul.f32 %v56, %v95
  %v115 = vmul.f32 %v56, %v99
  %v116 = vmul.f32 %v61, %v87
  %v117 = vmul.f32 %v61, %v91
  %v118 = vmul.f32 %v61, %v95
  %v119 = vmul.f32 %v61, %v99
  %v120 = vmul.f32 %v66, %v87
  %v121 = vmul.f32 %v66, %v91
  %v122 = vmul.f32 %v66, %v95
  %v123 = vmul.f32 %v66, %v99
  %v124 = vmul.f32 %v71, %v87
  %v125 = vmul.f32 %v71, %v91
  %v126 = vmul.f32 %v71, %v95
  %v127 = vmul.f32 %v71, %v99
  %v128 = vmul.f32 %v76, %v87
  %v129 = vmul.f32 %v76, %v91
  %v130 = vmul.f32 %v76, %v95
  %v131 = vmul.f32 %v76, %v99
  %v132 = vmul.f32 %v81, %v87
  %v133 = vmul.f32 %v81, %v91
  %v134 = vmul.f32 %v81, %v95
  %v135 = vmul.f32 %v81, %v99
  %v137 = vlaneseq
  %v138 = vshrl.u32 %v137, 7
  %v139 = vsub.s32 0, %v138
  %v140 = vrot.slane %v34, %v139
  %v141 = vlaneseq
  %v142 = vshrl.u32 %v141, 7
  %v143 = vsub.s32 1, %v142
  %v144 = vrot.slane %v34, %v143
  %v145 = vlaneseq
  %v146 = vshrl.u32 %v145, 7
  %v147 = vsub.s32 2, %v146
  %v148 = vrot.slane %v34, %v147
  %v149 = vlaneseq
  %v150 = vshrl.u32 %v149, 7
  %v151 = vsub.s32 3, %v150
  %v152 = vrot.slane %v34, %v151
  %v157 = vadd.f32 %v104, %v140
  %v158 = vadd.f32 %v105, %v144
  %v159 = vadd.f32 %v106, %v148
  %v160 = vadd.f32 %v107, %v152
  %v161 = vadd.f32 %v108, %v140
  %v162 = vadd.f32 %v109, %v144
  %v163 = vadd.f32 %v110, %v148
  %v164 = vadd.f32 %v111, %v152
  %v165 = vadd.f32 %v112, %v140
  %v166 = vadd.f32 %v113, %v144
  %v167 = vadd.f32 %v114, %v148
  %v168 = vadd.f32 %v115, %v152
  %v169 = vadd.f32 %v116, %v140
  %v170 = vadd.f32 %v117, %v144
  %v171 = vadd.f32 %v118, %v148
  %v172 = vadd.f32 %v119, %v152
  %v173 = vadd.f32 %v120, %v140
  %v174 = vadd.f32 %v121, %v144
  %v175 = vadd.f32 %v122, %v148
  %v176 = vadd.f32 %v123, %v152
  %v177 = vadd.f32 %v124, %v140
  %v178 = vadd.f32 %v125, %v144
  %v179 = vadd.f32 %v126, %v148
  %v180 = vadd.f32 %v127, %v152
  %v181 = vadd.f32 %v128, %v140
  %v182 = vadd.f32 %v129, %v144
  %v183 = vadd.f32 %v130, %v148
  %v184 = vadd.f32 %v131, %v152
  %v185 = vadd.f32 %v132, %v140
  %v186 = vadd.f32 %v133, %v144
  %v187 = vadd.f32 %v134, %v148
  %v188 = vadd.f32 %v135, %v152
  %vm189 = vcmask 80896
  %v191 = vsel %vm189, 0.0, 0
  %vm193 = vcmask 1041408
  %v195 = vsel %vm193, %v30, 0
  %v198 = vsel %vm193, %v31, 0
  %v201 = vsel %vm193, %v32, 0
  %v204 = vsel %vm193, %v33, 0
  %206 = vmatprep.subr.mxu0 0.0
  %207 = vmatpush1.msra.mxu0 0.0
  %208 = vmatprep.subr.mxu0 0.0
  %209 = vmatpush1.msra.mxu0 0.0
  %210 = vmatprep.subr.mxu0 0.0
  %211 = vmatpush1.msra.mxu0 0.0
  %212 = vmatprep.subr.mxu0 0.0
  %213 = vmatpush1.msra.mxu0 0.0
  %214 = vmatprep.subr.mxu0 0.0
  %215 = vmatpush1.msra.mxu0 0.0
  %216 = vmatprep.subr.mxu0 0.0
  %217 = vmatpush1.msra.mxu0 0.0
  %218 = vmatprep.subr.mxu0 0.0
  %219 = vmatpush1.msra.mxu0 0.0
  %220 = vmatprep.subr.mxu0 0.0
  %221 = vmatpush1.msra.mxu0 0.0
  %222 = vmatprep.subr.mxu0 0.0
  %223 = vmatpush1.msra.mxu0 0.0
  %224 = vmatprep.subr.mxu0 0.0
  %225 = vmatpush1.msra.mxu0 0.0
  %226 = vmatprep.subr.mxu0 0.0
  %227 = vmatpush1.msra.mxu0 0.0
  %228 = vmatprep.subr.mxu0 0.0
  %229 = vmatpush1.msra.mxu0 0.0
  %230 = vmatprep.subr.mxu0 0.0
  %231 = vmatpush1.msra.mxu0 0.0
  %232 = vmatprep.subr.mxu0 0.0
  %233 = vmatpush1.msra.mxu0 0.0
  %234 = vmatprep.subr.mxu0 %v198
  %235 = vmatpush1.msra.mxu0 %v195
  %236 = vmatprep.subr.mxu0 %v27
  %237 = vmatpush1.msra.mxu0 %v26
  %238 = vmatprep.subr.mxu0 0.0
  %239 = vmatpush2.msra.mxu0 0.0
  %240 = vmatprep.subr.mxu0 0.0
  %241 = vmatpush2.msra.mxu0 0.0
  %242 = vmatprep.subr.mxu0 0.0
  %243 = vmatpush2.msra.mxu0 0.0
  %244 = vmatprep.subr.mxu0 0.0
  %245 = vmatpush2.msra.mxu0 0.0
  %246 = vmatprep.subr.mxu0 0.0
  %247 = vmatpush2.msra.mxu0 0.0
  %248 = vmatprep.subr.mxu0 0.0
  %249 = vmatpush2.msra.mxu0 0.0
  %250 = vmatprep.subr.mxu0 0.0
  %251 = vmatpush2.msra.mxu0 0.0
  %252 = vmatprep.subr.mxu0 0.0
  %253 = vmatpush2.msra.mxu0 0.0
  %254 = vmatprep.subr.mxu0 0.0
  %255 = vmatpush2.msra.mxu0 0.0
  %256 = vmatprep.subr.mxu0 0.0
  %257 = vmatpush2.msra.mxu0 0.0
  %258 = vmatprep.subr.mxu0 0.0
  %259 = vmatpush2.msra.mxu0 0.0
  %260 = vmatprep.subr.mxu0 0.0
  %261 = vmatpush2.msra.mxu0 0.0
  %262 = vmatprep.subr.mxu0 0.0
  %263 = vmatpush2.msra.mxu0 0.0
  %264 = vmatprep.subr.mxu0 0.0
  %265 = vmatpush2.msra.mxu0 0.0
  %266 = vmatprep.subr.mxu0 0.0
  %267 = vmatpush2.msra.mxu0 0.0
  %268 = vmatprep.subr.mxu0 0.0
  %269 = vmatpush2.msra.mxu0 0.0
  %270 = vmatprep.mubr.f32.mxu0 0.0
  %271 = vmatmul.mubr.f32.gmra.mxu0 %v191
  %v272 = vpop.f32.mrf.mxu0
  %v273 = vadd.f32 0.0, %v272
  %v274 = vpop.f32.mrf.mxu0
  %v275 = vadd.f32 0.0, %v274
  %276 = vdwg.mxu0
  %277 = vmatprep.subr.mxu0 0.0
  %278 = vmatpush1.msra.mxu0 0.0
  %279 = vmatprep.subr.mxu0 0.0
  %280 = vmatpush1.msra.mxu0 0.0
  %281 = vmatprep.subr.mxu0 0.0
  %282 = vmatpush1.msra.mxu0 0.0
  %283 = vmatprep.subr.mxu0 0.0
  %284 = vmatpush1.msra.mxu0 0.0
  %285 = vmatprep.subr.mxu0 0.0
  %286 = vmatpush1.msra.mxu0 0.0
  %287 = vmatprep.subr.mxu0 0.0
  %288 = vmatpush1.msra.mxu0 0.0
  %289 = vmatprep.subr.mxu0 0.0
  %290 = vmatpush1.msra.mxu0 0.0
  %291 = vmatprep.subr.mxu0 0.0
  %292 = vmatpush1.msra.mxu0 0.0
  %293 = vmatprep.subr.mxu0 0.0
  %294 = vmatpush1.msra.mxu0 0.0
  %295 = vmatprep.subr.mxu0 0.0
  %296 = vmatpush1.msra.mxu0 0.0
  %297 = vmatprep.subr.mxu0 0.0
  %298 = vmatpush1.msra.mxu0 0.0
  %299 = vmatprep.subr.mxu0 0.0
  %300 = vmatpush1.msra.mxu0 0.0
  %301 = vmatprep.subr.mxu0 0.0
  %302 = vmatpush1.msra.mxu0 0.0
  %303 = vmatprep.subr.mxu0 0.0
  %304 = vmatpush1.msra.mxu0 0.0
  %305 = vmatprep.subr.mxu0 %v204
  %306 = vmatpush1.msra.mxu0 %v201
  %307 = vmatprep.subr.mxu0 %v29
  %308 = vmatpush1.msra.mxu0 %v28
  %309 = vmatprep.subr.mxu0 0.0
  %310 = vmatpush2.msra.mxu0 0.0
  %311 = vmatprep.subr.mxu0 0.0
  %312 = vmatpush2.msra.mxu0 0.0
  %313 = vmatprep.subr.mxu0 0.0
  %314 = vmatpush2.msra.mxu0 0.0
  %315 = vmatprep.subr.mxu0 0.0
  %316 = vmatpush2.msra.mxu0 0.0
  %317 = vmatprep.subr.mxu0 0.0
  %318 = vmatpush2.msra.mxu0 0.0
  %319 = vmatprep.subr.mxu0 0.0
  %320 = vmatpush2.msra.mxu0 0.0
  %321 = vmatprep.subr.mxu0 0.0
  %322 = vmatpush2.msra.mxu0 0.0
  %323 = vmatprep.subr.mxu0 0.0
  %324 = vmatpush2.msra.mxu0 0.0
  %325 = vmatprep.subr.mxu0 0.0
  %326 = vmatpush2.msra.mxu0 0.0
  %327 = vmatprep.subr.mxu0 0.0
  %328 = vmatpush2.msra.mxu0 0.0
  %329 = vmatprep.subr.mxu0 0.0
  %330 = vmatpush2.msra.mxu0 0.0
  %331 = vmatprep.subr.mxu0 0.0
  %332 = vmatpush2.msra.mxu0 0.0
  %333 = vmatprep.subr.mxu0 0.0
  %334 = vmatpush2.msra.mxu0 0.0
  %335 = vmatprep.subr.mxu0 0.0
  %336 = vmatpush2.msra.mxu0 0.0
  %337 = vmatprep.subr.mxu0 0.0
  %338 = vmatpush2.msra.mxu0 0.0
  %339 = vmatprep.subr.mxu0 0.0
  %340 = vmatpush2.msra.mxu0 0.0
  %341 = vmatprep.mubr.f32.mxu0 0.0
  %342 = vmatmul.mubr.f32.gmra.mxu0 %v191
  %v343 = vpop.f32.mrf.mxu0
  %v344 = vadd.f32 0.0, %v343
  %v345 = vpop.f32.mrf.mxu0
  %v346 = vadd.f32 0.0, %v345
  %347 = vdwg.mxu0
  %v348 = vadd.f32 %v157, %v273
  %v349 = vadd.f32 %v158, %v275
  %v350 = vadd.f32 %v159, %v344
  %v351 = vadd.f32 %v160, %v346
  %v352 = vtanh.pop %v348
  %v353 = vtanh.pop %v349
  %v354 = vtanh.pop %v350
  %v355 = vtanh.pop %v351
  %v356 = vadd.f32 %v352, 1.0
  %v357 = vmul.f32 %v356, 0.5
  %v358 = vadd.f32 %v353, 1.0
  %v359 = vmul.f32 %v358, 0.5
  %v360 = vadd.f32 %v355, 1.0
  %v361 = vmul.f32 %v360, 0.5
  %v362 = vmul.f32 %v359, 0.0
  %v363 = vmul.f32 %v357, %v354
  %v364 = vadd.f32 %v362, %v363
  %v365 = vtanh.pop %v364
  %v366 = vmul.f32 %v361, %v365
  %v368 = vsel %vm189, %v366, 0
  %370 = vmatprep.subr.mxu0 0.0
  %371 = vmatpush1.msra.mxu0 0.0
  %372 = vmatprep.subr.mxu0 0.0
  %373 = vmatpush1.msra.mxu0 0.0
  %374 = vmatprep.subr.mxu0 0.0
  %375 = vmatpush1.msra.mxu0 0.0
  %376 = vmatprep.subr.mxu0 0.0
  %377 = vmatpush1.msra.mxu0 0.0
  %378 = vmatprep.subr.mxu0 0.0
  %379 = vmatpush1.msra.mxu0 0.0
  %380 = vmatprep.subr.mxu0 0.0
  %381 = vmatpush1.msra.mxu0 0.0
  %382 = vmatprep.subr.mxu0 0.0
  %383 = vmatpush1.msra.mxu0 0.0
  %384 = vmatprep.subr.mxu0 0.0
  %385 = vmatpush1.msra.mxu0 0.0
  %386 = vmatprep.subr.mxu0 0.0
  %387 = vmatpush1.msra.mxu0 0.0
  %388 = vmatprep.subr.mxu0 0.0
  %389 = vmatpush1.msra.mxu0 0.0
  %390 = vmatprep.subr.mxu0 0.0
  %391 = vmatpush1.msra.mxu0 0.0
  %392 = vmatprep.subr.mxu0 0.0
  %393 = vmatpush1.msra.mxu0 0.0
  %394 = vmatprep.subr.mxu0 0.0
  %395 = vmatpush1.msra.mxu0 0.0
  %396 = vmatprep.subr.mxu0 0.0
  %397 = vmatpush1.msra.mxu0 0.0
  %398 = vmatprep.subr.mxu0 %v198
  %399 = vmatpush1.msra.mxu0 %v195
  %400 = vmatprep.subr.mxu0 %v27
  %401 = vmatpush1.msra.mxu0 %v26
  %402 = vmatprep.subr.mxu0 0.0
  %403 = vmatpush2.msra.mxu0 0.0
  %404 = vmatprep.subr.mxu0 0.0
  %405 = vmatpush2.msra.mxu0 0.0
  %406 = vmatprep.subr.mxu0 0.0
  %407 = vmatpush2.msra.mxu0 0.0
  %408 = vmatprep.subr.mxu0 0.0
  %409 = vmatpush2.msra.mxu0 0.0
  %410 = vmatprep.subr.mxu0 0.0
  %411 = vmatpush2.msra.mxu0 0.0
  %412 = vmatprep.subr.mxu0 0.0
  %413 = vmatpush2.msra.mxu0 0.0
  %414 = vmatprep.subr.mxu0 0.0
  %415 = vmatpush2.msra.mxu0 0.0
  %416 = vmatprep.subr.mxu0 0.0
  %417 = vmatpush2.msra.mxu0 0.0
  %418 = vmatprep.subr.mxu0 0.0
  %419 = vmatpush2.msra.mxu0 0.0
  %420 = vmatprep.subr.mxu0 0.0
  %421 = vmatpush2.msra.mxu0 0.0
  %422 = vmatprep.subr.mxu0 0.0
  %423 = vmatpush2.msra.mxu0 0.0
  %424 = vmatprep.subr.mxu0 0.0
  %425 = vmatpush2.msra.mxu0 0.0
  %426 = vmatprep.subr.mxu0 0.0
  %427 = vmatpush2.msra.mxu0 0.0
  %428 = vmatprep.subr.mxu0 0.0
  %429 = vmatpush2.msra.mxu0 0.0
  %430 = vmatprep.subr.mxu0 0.0
  %431 = vmatpush2.msra.mxu0 0.0
  %432 = vmatprep.subr.mxu0 0.0
  %433 = vmatpush2.msra.mxu0 0.0
  %434 = vmatprep.mubr.f32.mxu0 0.0
  %435 = vmatmul.mubr.f32.gmra.mxu0 %v368
  %v436 = vpop.f32.mrf.mxu0
  %v437 = vadd.f32 0.0, %v436
  %v438 = vpop.f32.mrf.mxu0
  %v439 = vadd.f32 0.0, %v438
  %440 = vdwg.mxu0
  %441 = vmatprep.subr.mxu0 0.0
  %442 = vmatpush1.msra.mxu0 0.0
  %443 = vmatprep.subr.mxu0 0.0
  %444 = vmatpush1.msra.mxu0 0.0
  %445 = vmatprep.subr.mxu0 0.0
  %446 = vmatpush1.msra.mxu0 0.0
  %447 = vmatprep.subr.mxu0 0.0
  %448 = vmatpush1.msra.mxu0 0.0
  %449 = vmatprep.subr.mxu0 0.0
  %450 = vmatpush1.msra.mxu0 0.0
  %451 = vmatprep.subr.mxu0 0.0
  %452 = vmatpush1.msra.mxu0 0.0
  %453 = vmatprep.subr.mxu0 0.0
  %454 = vmatpush1.msra.mxu0 0.0
  %455 = vmatprep.subr.mxu0 0.0
  %456 = vmatpush1.msra.mxu0 0.0
  %457 = vmatprep.subr.mxu0 0.0
  %458 = vmatpush1.msra.mxu0 0.0
  %459 = vmatprep.subr.mxu0 0.0
  %460 = vmatpush1.msra.mxu0 0.0
  %461 = vmatprep.subr.mxu0 0.0
  %462 = vmatpush1.msra.mxu0 0.0
  %463 = vmatprep.subr.mxu0 0.0
  %464 = vmatpush1.msra.mxu0 0.0
  %465 = vmatprep.subr.mxu0 0.0
  %466 = vmatpush1.msra.mxu0 0.0
  %467 = vmatprep.subr.mxu0 0.0
  %468 = vmatpush1.msra.mxu0 0.0
  %469 = vmatprep.subr.mxu0 %v204
  %470 = vmatpush1.msra.mxu0 %v201
  %471 = vmatprep.subr.mxu0 %v29
  %472 = vmatpush1.msra.mxu0 %v28
  %473 = vmatprep.subr.mxu0 0.0
  %474 = vmatpush2.msra.mxu0 0.0
  %475 = vmatprep.subr.mxu0 0.0
  %476 = vmatpush2.msra.mxu0 0.0
  %477 = vmatprep.subr.mxu0 0.0
  %478 = vmatpush2.msra.mxu0 0.0
  %479 = vmatprep.subr.mxu0 0.0
  %480 = vmatpush2.msra.mxu0 0.0
  %481 = vmatprep.subr.mxu0 0.0
  %482 = vmatpush2.msra.mxu0 0.0
  %483 = vmatprep.subr.mxu0 0.0
  %484 = vmatpush2.msra.mxu0 0.0
  %485 = vmatprep.subr.mxu0 0.0
  %486 = vmatpush2.msra.mxu0 0.0
  %487 = vmatprep.subr.mxu0 0.0
  %488 = vmatpush2.msra.mxu0 0.0
  %489 = vmatprep.subr.mxu0 0.0
  %490 = vmatpush2.msra.mxu0 0.0
  %491 = vmatprep.subr.mxu0 0.0
  %492 = vmatpush2.msra.mxu0 0.0
  %493 = vmatprep.subr.mxu0 0.0
  %494 = vmatpush2.msra.mxu0 0.0
  %495 = vmatprep.subr.mxu0 0.0
  %496 = vmatpush2.msra.mxu0 0.0
  %497 = vmatprep.subr.mxu0 0.0
  %498 = vmatpush2.msra.mxu0 0.0
  %499 = vmatprep.subr.mxu0 0.0
  %500 = vmatpush2.msra.mxu0 0.0
  %501 = vmatprep.subr.mxu0 0.0
  %502 = vmatpush2.msra.mxu0 0.0
  %503 = vmatprep.subr.mxu0 0.0
  %504 = vmatpush2.msra.mxu0 0.0
  %505 = vmatprep.mubr.f32.mxu0 0.0
  %506 = vmatmul.mubr.f32.gmra.mxu0 %v368
  %v507 = vpop.f32.mrf.mxu0
  %v508 = vadd.f32 0.0, %v507
  %v509 = vpop.f32.mrf.mxu0
  %v510 = vadd.f32 0.0, %v509
  %511 = vdwg.mxu0
  %v512 = vadd.f32 %v161, %v437
  %v513 = vadd.f32 %v162, %v439
  %v514 = vadd.f32 %v163, %v508
  %v515 = vadd.f32 %v164, %v510
  %v516 = vtanh.pop %v512
  %v517 = vtanh.pop %v513
  %v518 = vtanh.pop %v514
  %v519 = vtanh.pop %v515
  %v520 = vadd.f32 %v516, 1.0
  %v521 = vmul.f32 %v520, 0.5
  %v522 = vadd.f32 %v517, 1.0
  %v523 = vmul.f32 %v522, 0.5
  %v524 = vadd.f32 %v519, 1.0
  %v525 = vmul.f32 %v524, 0.5
  %v526 = vmul.f32 %v523, %v364
  %v527 = vmul.f32 %v521, %v518
  %v528 = vadd.f32 %v526, %v527
  %v529 = vtanh.pop %v528
  %v530 = vmul.f32 %v525, %v529
  %v532 = vsel %vm189, %v530, 0
  %534 = vmatprep.subr.mxu0 0.0
  %535 = vmatpush1.msra.mxu0 0.0
  %536 = vmatprep.subr.mxu0 0.0
  %537 = vmatpush1.msra.mxu0 0.0
  %538 = vmatprep.subr.mxu0 0.0
  %539 = vmatpush1.msra.mxu0 0.0
  %540 = vmatprep.subr.mxu0 0.0
  %541 = vmatpush1.msra.mxu0 0.0
  %542 = vmatprep.subr.mxu0 0.0
  %543 = vmatpush1.msra.mxu0 0.0
  %544 = vmatprep.subr.mxu0 0.0
  %545 = vmatpush1.msra.mxu0 0.0
  %546 = vmatprep.subr.mxu0 0.0
  %547 = vmatpush1.msra.mxu0 0.0
  %548 = vmatprep.subr.mxu0 0.0
  %549 = vmatpush1.msra.mxu0 0.0
  %550 = vmatprep.subr.mxu0 0.0
  %551 = vmatpush1.msra.mxu0 0.0
  %552 = vmatprep.subr.mxu0 0.0
  %553 = vmatpush1.msra.mxu0 0.0
  %554 = vmatprep.subr.mxu0 0.0
  %555 = vmatpush1.msra.mxu0 0.0
  %556 = vmatprep.subr.mxu0 0.0
  %557 = vmatpush1.msra.mxu0 0.0
  %558 = vmatprep.subr.mxu0 0.0
  %559 = vmatpush1.msra.mxu0 0.0
  %560 = vmatprep.subr.mxu0 0.0
  %561 = vmatpush1.msra.mxu0 0.0
  %562 = vmatprep.subr.mxu0 %v198
  %563 = vmatpush1.msra.mxu0 %v195
  %564 = vmatprep.subr.mxu0 %v27
  %565 = vmatpush1.msra.mxu0 %v26
  %566 = vmatprep.subr.mxu0 0.0
  %567 = vmatpush2.msra.mxu0 0.0
  %568 = vmatprep.subr.mxu0 0.0
  %569 = vmatpush2.msra.mxu0 0.0
  %570 = vmatprep.subr.mxu0 0.0
  %571 = vmatpush2.msra.mxu0 0.0
  %572 = vmatprep.subr.mxu0 0.0
  %573 = vmatpush2.msra.mxu0 0.0
  %574 = vmatprep.subr.mxu0 0.0
  %575 = vmatpush2.msra.mxu0 0.0
  %576 = vmatprep.subr.mxu0 0.0
  %577 = vmatpush2.msra.mxu0 0.0
  %578 = vmatprep.subr.mxu0 0.0
  %579 = vmatpush2.msra.mxu0 0.0
  %580 = vmatprep.subr.mxu0 0.0
  %581 = vmatpush2.msra.mxu0 0.0
  %582 = vmatprep.subr.mxu0 0.0
  %583 = vmatpush2.msra.mxu0 0.0
  %584 = vmatprep.subr.mxu0 0.0
  %585 = vmatpush2.msra.mxu0 0.0
  %586 = vmatprep.subr.mxu0 0.0
  %587 = vmatpush2.msra.mxu0 0.0
  %588 = vmatprep.subr.mxu0 0.0
  %589 = vmatpush2.msra.mxu0 0.0
  %590 = vmatprep.subr.mxu0 0.0
  %591 = vmatpush2.msra.mxu0 0.0
  %592 = vmatprep.subr.mxu0 0.0
  %593 = vmatpush2.msra.mxu0 0.0
  %594 = vmatprep.subr.mxu0 0.0
  %595 = vmatpush2.msra.mxu0 0.0
  %596 = vmatprep.subr.mxu0 0.0
  %597 = vmatpush2.msra.mxu0 0.0
  %598 = vmatprep.mubr.f32.mxu0 0.0
  %599 = vmatmul.mubr.f32.gmra.mxu0 %v532
  %v600 = vpop.f32.mrf.mxu0
  %v601 = vadd.f32 0.0, %v600
  %v602 = vpop.f32.mrf.mxu0
  %v603 = vadd.f32 0.0, %v602
  %604 = vdwg.mxu0
  %605 = vmatprep.subr.mxu0 0.0
  %606 = vmatpush1.msra.mxu0 0.0
  %607 = vmatprep.subr.mxu0 0.0
  %608 = vmatpush1.msra.mxu0 0.0
  %609 = vmatprep.subr.mxu0 0.0
  %610 = vmatpush1.msra.mxu0 0.0
  %611 = vmatprep.subr.mxu0 0.0
  %612 = vmatpush1.msra.mxu0 0.0
  %613 = vmatprep.subr.mxu0 0.0
  %614 = vmatpush1.msra.mxu0 0.0
  %615 = vmatprep.subr.mxu0 0.0
  %616 = vmatpush1.msra.mxu0 0.0
  %617 = vmatprep.subr.mxu0 0.0
  %618 = vmatpush1.msra.mxu0 0.0
  %619 = vmatprep.subr.mxu0 0.0
  %620 = vmatpush1.msra.mxu0 0.0
  %621 = vmatprep.subr.mxu0 0.0
  %622 = vmatpush1.msra.mxu0 0.0
  %623 = vmatprep.subr.mxu0 0.0
  %624 = vmatpush1.msra.mxu0 0.0
  %625 = vmatprep.subr.mxu0 0.0
  %626 = vmatpush1.msra.mxu0 0.0
  %627 = vmatprep.subr.mxu0 0.0
  %628 = vmatpush1.msra.mxu0 0.0
  %629 = vmatprep.subr.mxu0 0.0
  %630 = vmatpush1.msra.mxu0 0.0
  %631 = vmatprep.subr.mxu0 0.0
  %632 = vmatpush1.msra.mxu0 0.0
  %633 = vmatprep.subr.mxu0 %v204
  %634 = vmatpush1.msra.mxu0 %v201
  %635 = vmatprep.subr.mxu0 %v29
  %636 = vmatpush1.msra.mxu0 %v28
  %637 = vmatprep.subr.mxu0 0.0
  %638 = vmatpush2.msra.mxu0 0.0
  %639 = vmatprep.subr.mxu0 0.0
  %640 = vmatpush2.msra.mxu0 0.0
  %641 = vmatprep.subr.mxu0 0.0
  %642 = vmatpush2.msra.mxu0 0.0
  %643 = vmatprep.subr.mxu0 0.0
  %644 = vmatpush2.msra.mxu0 0.0
  %645 = vmatprep.subr.mxu0 0.0
  %646 = vmatpush2.msra.mxu0 0.0
  %647 = vmatprep.subr.mxu0 0.0
  %648 = vmatpush2.msra.mxu0 0.0
  %649 = vmatprep.subr.mxu0 0.0
  %650 = vmatpush2.msra.mxu0 0.0
  %651 = vmatprep.subr.mxu0 0.0
  %652 = vmatpush2.msra.mxu0 0.0
  %653 = vmatprep.subr.mxu0 0.0
  %654 = vmatpush2.msra.mxu0 0.0
  %655 = vmatprep.subr.mxu0 0.0
  %656 = vmatpush2.msra.mxu0 0.0
  %657 = vmatprep.subr.mxu0 0.0
  %658 = vmatpush2.msra.mxu0 0.0
  %659 = vmatprep.subr.mxu0 0.0
  %660 = vmatpush2.msra.mxu0 0.0
  %661 = vmatprep.subr.mxu0 0.0
  %662 = vmatpush2.msra.mxu0 0.0
  %663 = vmatprep.subr.mxu0 0.0
  %664 = vmatpush2.msra.mxu0 0.0
  %665 = vmatprep.subr.mxu0 0.0
  %666 = vmatpush2.msra.mxu0 0.0
  %667 = vmatprep.subr.mxu0 0.0
  %668 = vmatpush2.msra.mxu0 0.0
  %669 = vmatprep.mubr.f32.mxu0 0.0
  %670 = vmatmul.mubr.f32.gmra.mxu0 %v532
  %v671 = vpop.f32.mrf.mxu0
  %v672 = vadd.f32 0.0, %v671
  %v673 = vpop.f32.mrf.mxu0
  %v674 = vadd.f32 0.0, %v673
  %675 = vdwg.mxu0
  %v676 = vadd.f32 %v165, %v601
  %v677 = vadd.f32 %v166, %v603
  %v678 = vadd.f32 %v167, %v672
  %v679 = vadd.f32 %v168, %v674
  %v680 = vtanh.pop %v676
  %v681 = vtanh.pop %v677
  %v682 = vtanh.pop %v678
  %v683 = vtanh.pop %v679
  %v684 = vadd.f32 %v680, 1.0
  %v685 = vmul.f32 %v684, 0.5
  %v686 = vadd.f32 %v681, 1.0
  %v687 = vmul.f32 %v686, 0.5
  %v688 = vadd.f32 %v683, 1.0
  %v689 = vmul.f32 %v688, 0.5
  %v690 = vmul.f32 %v687, %v528
  %v691 = vmul.f32 %v685, %v682
  %v692 = vadd.f32 %v690, %v691
  %v693 = vtanh.pop %v692
  %v694 = vmul.f32 %v689, %v693
  %v696 = vsel %vm189, %v694, 0
  %698 = vmatprep.subr.mxu0 0.0
  %699 = vmatpush1.msra.mxu0 0.0
  %700 = vmatprep.subr.mxu0 0.0
  %701 = vmatpush1.msra.mxu0 0.0
  %702 = vmatprep.subr.mxu0 0.0
  %703 = vmatpush1.msra.mxu0 0.0
  %704 = vmatprep.subr.mxu0 0.0
  %705 = vmatpush1.msra.mxu0 0.0
  %706 = vmatprep.subr.mxu0 0.0
  %707 = vmatpush1.msra.mxu0 0.0
  %708 = vmatprep.subr.mxu0 0.0
  %709 = vmatpush1.msra.mxu0 0.0
  %710 = vmatprep.subr.mxu0 0.0
  %711 = vmatpush1.msra.mxu0 0.0
  %712 = vmatprep.subr.mxu0 0.0
  %713 = vmatpush1.msra.mxu0 0.0
  %714 = vmatprep.subr.mxu0 0.0
  %715 = vmatpush1.msra.mxu0 0.0
  %716 = vmatprep.subr.mxu0 0.0
  %717 = vmatpush1.msra.mxu0 0.0
  %718 = vmatprep.subr.mxu0 0.0
  %719 = vmatpush1.msra.mxu0 0.0
  %720 = vmatprep.subr.mxu0 0.0
  %721 = vmatpush1.msra.mxu0 0.0
  %722 = vmatprep.subr.mxu0 0.0
  %723 = vmatpush1.msra.mxu0 0.0
  %724 = vmatprep.subr.mxu0 0.0
  %725 = vmatpush1.msra.mxu0 0.0
  %726 = vmatprep.subr.mxu0 %v198
  %727 = vmatpush1.msra.mxu0 %v195
  %728 = vmatprep.subr.mxu0 %v27
  %729 = vmatpush1.msra.mxu0 %v26
  %730 = vmatprep.subr.mxu0 0.0
  %731 = vmatpush2.msra.mxu0 0.0
  %732 = vmatprep.subr.mxu0 0.0
  %733 = vmatpush2.msra.mxu0 0.0
  %734 = vmatprep.subr.mxu0 0.0
  %735 = vmatpush2.msra.mxu0 0.0
  %736 = vmatprep.subr.mxu0 0.0
  %737 = vmatpush2.msra.mxu0 0.0
  %738 = vmatprep.subr.mxu0 0.0
  %739 = vmatpush2.msra.mxu0 0.0
  %740 = vmatprep.subr.mxu0 0.0
  %741 = vmatpush2.msra.mxu0 0.0
  %742 = vmatprep.subr.mxu0 0.0
  %743 = vmatpush2.msra.mxu0 0.0
  %744 = vmatprep.subr.mxu0 0.0
  %745 = vmatpush2.msra.mxu0 0.0
  %746 = vmatprep.subr.mxu0 0.0
  %747 = vmatpush2.msra.mxu0 0.0
  %748 = vmatprep.subr.mxu0 0.0
  %749 = vmatpush2.msra.mxu0 0.0
  %750 = vmatprep.subr.mxu0 0.0
  %751 = vmatpush2.msra.mxu0 0.0
  %752 = vmatprep.subr.mxu0 0.0
  %753 = vmatpush2.msra.mxu0 0.0
  %754 = vmatprep.subr.mxu0 0.0
  %755 = vmatpush2.msra.mxu0 0.0
  %756 = vmatprep.subr.mxu0 0.0
  %757 = vmatpush2.msra.mxu0 0.0
  %758 = vmatprep.subr.mxu0 0.0
  %759 = vmatpush2.msra.mxu0 0.0
  %760 = vmatprep.subr.mxu0 0.0
  %761 = vmatpush2.msra.mxu0 0.0
  %762 = vmatprep.mubr.f32.mxu0 0.0
  %763 = vmatmul.mubr.f32.gmra.mxu0 %v696
  %v764 = vpop.f32.mrf.mxu0
  %v765 = vadd.f32 0.0, %v764
  %v766 = vpop.f32.mrf.mxu0
  %v767 = vadd.f32 0.0, %v766
  %768 = vdwg.mxu0
  %769 = vmatprep.subr.mxu0 0.0
  %770 = vmatpush1.msra.mxu0 0.0
  %771 = vmatprep.subr.mxu0 0.0
  %772 = vmatpush1.msra.mxu0 0.0
  %773 = vmatprep.subr.mxu0 0.0
  %774 = vmatpush1.msra.mxu0 0.0
  %775 = vmatprep.subr.mxu0 0.0
  %776 = vmatpush1.msra.mxu0 0.0
  %777 = vmatprep.subr.mxu0 0.0
  %778 = vmatpush1.msra.mxu0 0.0
  %779 = vmatprep.subr.mxu0 0.0
  %780 = vmatpush1.msra.mxu0 0.0
  %781 = vmatprep.subr.mxu0 0.0
  %782 = vmatpush1.msra.mxu0 0.0
  %783 = vmatprep.subr.mxu0 0.0
  %784 = vmatpush1.msra.mxu0 0.0
  %785 = vmatprep.subr.mxu0 0.0
  %786 = vmatpush1.msra.mxu0 0.0
  %787 = vmatprep.subr.mxu0 0.0
  %788 = vmatpush1.msra.mxu0 0.0
  %789 = vmatprep.subr.mxu0 0.0
  %790 = vmatpush1.msra.mxu0 0.0
  %791 = vmatprep.subr.mxu0 0.0
  %792 = vmatpush1.msra.mxu0 0.0
  %793 = vmatprep.subr.mxu0 0.0
  %794 = vmatpush1.msra.mxu0 0.0
  %795 = vmatprep.subr.mxu0 0.0
  %796 = vmatpush1.msra.mxu0 0.0
  %797 = vmatprep.subr.mxu0 %v204
  %798 = vmatpush1.msra.mxu0 %v201
  %799 = vmatprep.subr.mxu0 %v29
  %800 = vmatpush1.msra.mxu0 %v28
  %801 = vmatprep.subr.mxu0 0.0
  %802 = vmatpush2.msra.mxu0 0.0
  %803 = vmatprep.subr.mxu0 0.0
  %804 = vmatpush2.msra.mxu0 0.0
  %805 = vmatprep.subr.mxu0 0.0
  %806 = vmatpush2.msra.mxu0 0.0
  %807 = vmatprep.subr.mxu0 0.0
  %808 = vmatpush2.msra.mxu0 0.0
  %809 = vmatprep.subr.mxu0 0.0
  %810 = vmatpush2.msra.mxu0 0.0
  %811 = vmatprep.subr.mxu0 0.0
  %812 = vmatpush2.msra.mxu0 0.0
  %813 = vmatprep.subr.mxu0 0.0
  %814 = vmatpush2.msra.mxu0 0.0
  %815 = vmatprep.subr.mxu0 0.0
  %816 = vmatpush2.msra.mxu0 0.0
  %817 = vmatprep.subr.mxu0 0.0
  %818 = vmatpush2.msra.mxu0 0.0
  %819 = vmatprep.subr.mxu0 0.0
  %820 = vmatpush2.msra.mxu0 0.0
  %821 = vmatprep.subr.mxu0 0.0
  %822 = vmatpush2.msra.mxu0 0.0
  %823 = vmatprep.subr.mxu0 0.0
  %824 = vmatpush2.msra.mxu0 0.0
  %825 = vmatprep.subr.mxu0 0.0
  %826 = vmatpush2.msra.mxu0 0.0
  %827 = vmatprep.subr.mxu0 0.0
  %828 = vmatpush2.msra.mxu0 0.0
  %829 = vmatprep.subr.mxu0 0.0
  %830 = vmatpush2.msra.mxu0 0.0
  %831 = vmatprep.subr.mxu0 0.0
  %832 = vmatpush2.msra.mxu0 0.0
  %833 = vmatprep.mubr.f32.mxu0 0.0
  %834 = vmatmul.mubr.f32.gmra.mxu0 %v696
  %v835 = vpop.f32.mrf.mxu0
  %v836 = vadd.f32 0.0, %v835
  %v837 = vpop.f32.mrf.mxu0
  %v838 = vadd.f32 0.0, %v837
  %839 = vdwg.mxu0
  %v840 = vadd.f32 %v169, %v765
  %v841 = vadd.f32 %v170, %v767
  %v842 = vadd.f32 %v171, %v836
  %v843 = vadd.f32 %v172, %v838
  %v844 = vtanh.pop %v840
  %v845 = vtanh.pop %v841
  %v846 = vtanh.pop %v842
  %v847 = vtanh.pop %v843
  %v848 = vadd.f32 %v844, 1.0
  %v849 = vmul.f32 %v848, 0.5
  %v850 = vadd.f32 %v845, 1.0
  %v851 = vmul.f32 %v850, 0.5
  %v852 = vadd.f32 %v847, 1.0
  %v853 = vmul.f32 %v852, 0.5
  %v854 = vmul.f32 %v851, %v692
  %v855 = vmul.f32 %v849, %v846
  %v856 = vadd.f32 %v854, %v855
  %v857 = vtanh.pop %v856
  %v858 = vmul.f32 %v853, %v857
  %v860 = vsel %vm189, %v858, 0
  %862 = vmatprep.subr.mxu0 0.0
  %863 = vmatpush1.msra.mxu0 0.0
  %864 = vmatprep.subr.mxu0 0.0
  %865 = vmatpush1.msra.mxu0 0.0
  %866 = vmatprep.subr.mxu0 0.0
  %867 = vmatpush1.msra.mxu0 0.0
  %868 = vmatprep.subr.mxu0 0.0
  %869 = vmatpush1.msra.mxu0 0.0
  %870 = vmatprep.subr.mxu0 0.0
  %871 = vmatpush1.msra.mxu0 0.0
  %872 = vmatprep.subr.mxu0 0.0
  %873 = vmatpush1.msra.mxu0 0.0
  %874 = vmatprep.subr.mxu0 0.0
  %875 = vmatpush1.msra.mxu0 0.0
  %876 = vmatprep.subr.mxu0 0.0
  %877 = vmatpush1.msra.mxu0 0.0
  %878 = vmatprep.subr.mxu0 0.0
  %879 = vmatpush1.msra.mxu0 0.0
  %880 = vmatprep.subr.mxu0 0.0
  %881 = vmatpush1.msra.mxu0 0.0
  %882 = vmatprep.subr.mxu0 0.0
  %883 = vmatpush1.msra.mxu0 0.0
  %884 = vmatprep.subr.mxu0 0.0
  %885 = vmatpush1.msra.mxu0 0.0
  %886 = vmatprep.subr.mxu0 0.0
  %887 = vmatpush1.msra.mxu0 0.0
  %888 = vmatprep.subr.mxu0 0.0
  %889 = vmatpush1.msra.mxu0 0.0
  %890 = vmatprep.subr.mxu0 %v198
  %891 = vmatpush1.msra.mxu0 %v195
  %892 = vmatprep.subr.mxu0 %v27
  %893 = vmatpush1.msra.mxu0 %v26
  %894 = vmatprep.subr.mxu0 0.0
  %895 = vmatpush2.msra.mxu0 0.0
  %896 = vmatprep.subr.mxu0 0.0
  %897 = vmatpush2.msra.mxu0 0.0
  %898 = vmatprep.subr.mxu0 0.0
  %899 = vmatpush2.msra.mxu0 0.0
  %900 = vmatprep.subr.mxu0 0.0
  %901 = vmatpush2.msra.mxu0 0.0
  %902 = vmatprep.subr.mxu0 0.0
  %903 = vmatpush2.msra.mxu0 0.0
  %904 = vmatprep.subr.mxu0 0.0
  %905 = vmatpush2.msra.mxu0 0.0
  %906 = vmatprep.subr.mxu0 0.0
  %907 = vmatpush2.msra.mxu0 0.0
  %908 = vmatprep.subr.mxu0 0.0
  %909 = vmatpush2.msra.mxu0 0.0
  %910 = vmatprep.subr.mxu0 0.0
  %911 = vmatpush2.msra.mxu0 0.0
  %912 = vmatprep.subr.mxu0 0.0
  %913 = vmatpush2.msra.mxu0 0.0
  %914 = vmatprep.subr.mxu0 0.0
  %915 = vmatpush2.msra.mxu0 0.0
  %916 = vmatprep.subr.mxu0 0.0
  %917 = vmatpush2.msra.mxu0 0.0
  %918 = vmatprep.subr.mxu0 0.0
  %919 = vmatpush2.msra.mxu0 0.0
  %920 = vmatprep.subr.mxu0 0.0
  %921 = vmatpush2.msra.mxu0 0.0
  %922 = vmatprep.subr.mxu0 0.0
  %923 = vmatpush2.msra.mxu0 0.0
  %924 = vmatprep.subr.mxu0 0.0
  %925 = vmatpush2.msra.mxu0 0.0
  %926 = vmatprep.mubr.f32.mxu0 0.0
  %927 = vmatmul.mubr.f32.gmra.mxu0 %v860
  %v928 = vpop.f32.mrf.mxu0
  %v929 = vadd.f32 0.0, %v928
  %v930 = vpop.f32.mrf.mxu0
  %v931 = vadd.f32 0.0, %v930
  %932 = vdwg.mxu0
  %933 = vmatprep.subr.mxu0 0.0
  %934 = vmatpush1.msra.mxu0 0.0
  %935 = vmatprep.subr.mxu0 0.0
  %936 = vmatpush1.msra.mxu0 0.0
  %937 = vmatprep.subr.mxu0 0.0
  %938 = vmatpush1.msra.mxu0 0.0
  %939 = vmatprep.subr.mxu0 0.0
  %940 = vmatpush1.msra.mxu0 0.0
  %941 = vmatprep.subr.mxu0 0.0
  %942 = vmatpush1.msra.mxu0 0.0
  %943 = vmatprep.subr.mxu0 0.0
  %944 = vmatpush1.msra.mxu0 0.0
  %945 = vmatprep.subr.mxu0 0.0
  %946 = vmatpush1.msra.mxu0 0.0
  %947 = vmatprep.subr.mxu0 0.0
  %948 = vmatpush1.msra.mxu0 0.0
  %949 = vmatprep.subr.mxu0 0.0
  %950 = vmatpush1.msra.mxu0 0.0
  %951 = vmatprep.subr.mxu0 0.0
  %952 = vmatpush1.msra.mxu0 0.0
  %953 = vmatprep.subr.mxu0 0.0
  %954 = vmatpush1.msra.mxu0 0.0
  %955 = vmatprep.subr.mxu0 0.0
  %956 = vmatpush1.msra.mxu0 0.0
  %957 = vmatprep.subr.mxu0 0.0
  %958 = vmatpush1.msra.mxu0 0.0
  %959 = vmatprep.subr.mxu0 0.0
  %960 = vmatpush1.msra.mxu0 0.0
  %961 = vmatprep.subr.mxu0 %v204
  %962 = vmatpush1.msra.mxu0 %v201
  %963 = vmatprep.subr.mxu0 %v29
  %964 = vmatpush1.msra.mxu0 %v28
  %965 = vmatprep.subr.mxu0 0.0
  %966 = vmatpush2.msra.mxu0 0.0
  %967 = vmatprep.subr.mxu0 0.0
  %968 = vmatpush2.msra.mxu0 0.0
  %969 = vmatprep.subr.mxu0 0.0
  %970 = vmatpush2.msra.mxu0 0.0
  %971 = vmatprep.subr.mxu0 0.0
  %972 = vmatpush2.msra.mxu0 0.0
  %973 = vmatprep.subr.mxu0 0.0
  %974 = vmatpush2.msra.mxu0 0.0
  %975 = vmatprep.subr.mxu0 0.0
  %976 = vmatpush2.msra.mxu0 0.0
  %977 = vmatprep.subr.mxu0 0.0
  %978 = vmatpush2.msra.mxu0 0.0
  %979 = vmatprep.subr.mxu0 0.0
  %980 = vmatpush2.msra.mxu0 0.0
  %981 = vmatprep.subr.mxu0 0.0
  %982 = vmatpush2.msra.mxu0 0.0
  %983 = vmatprep.subr.mxu0 0.0
  %984 = vmatpush2.msra.mxu0 0.0
  %985 = vmatprep.subr.mxu0 0.0
  %986 = vmatpush2.msra.mxu0 0.0
  %987 = vmatprep.subr.mxu0 0.0
  %988 = vmatpush2.msra.mxu0 0.0
  %989 = vmatprep.subr.mxu0 0.0
  %990 = vmatpush2.msra.mxu0 0.0
  %991 = vmatprep.subr.mxu0 0.0
  %992 = vmatpush2.msra.mxu0 0.0
  %993 = vmatprep.subr.mxu0 0.0
  %994 = vmatpush2.msra.mxu0 0.0
  %995 = vmatprep.subr.mxu0 0.0
  %996 = vmatpush2.msra.mxu0 0.0
  %997 = vmatprep.mubr.f32.mxu0 0.0
  %998 = vmatmul.mubr.f32.gmra.mxu0 %v860
  %v999 = vpop.f32.mrf.mxu0
  %v1000 = vadd.f32 0.0, %v999
  %v1001 = vpop.f32.mrf.mxu0
  %v1002 = vadd.f32 0.0, %v1001
  %1003 = vdwg.mxu0
  %v1004 = vadd.f32 %v173, %v929
  %v1005 = vadd.f32 %v174, %v931
  %v1006 = vadd.f32 %v175, %v1000
  %v1007 = vadd.f32 %v176, %v1002
  %v1008 = vtanh.pop %v1004
  %v1009 = vtanh.pop %v1005
  %v1010 = vtanh.pop %v1006
  %v1011 = vtanh.pop %v1007
  %v1012 = vadd.f32 %v1008, 1.0
  %v1013 = vmul.f32 %v1012, 0.5
  %v1014 = vadd.f32 %v1009, 1.0
  %v1015 = vmul.f32 %v1014, 0.5
  %v1016 = vadd.f32 %v1011, 1.0
  %v1017 = vmul.f32 %v1016, 0.5
  %v1018 = vmul.f32 %v1015, %v856
  %v1019 = vmul.f32 %v1013, %v1010
  %v1020 = vadd.f32 %v1018, %v1019
  %v1021 = vtanh.pop %v1020
  %v1022 = vmul.f32 %v1017, %v1021
  %v1024 = vsel %vm189, %v1022, 0
  %1026 = vmatprep.subr.mxu0 0.0
  %1027 = vmatpush1.msra.mxu0 0.0
  %1028 = vmatprep.subr.mxu0 0.0
  %1029 = vmatpush1.msra.mxu0 0.0
  %1030 = vmatprep.subr.mxu0 0.0
  %1031 = vmatpush1.msra.mxu0 0.0
  %1032 = vmatprep.subr.mxu0 0.0
  %1033 = vmatpush1.msra.mxu0 0.0
  %1034 = vmatprep.subr.mxu0 0.0
  %1035 = vmatpush1.msra.mxu0 0.0
  %1036 = vmatprep.subr.mxu0 0.0
  %1037 = vmatpush1.msra.mxu0 0.0
  %1038 = vmatprep.subr.mxu0 0.0
  %1039 = vmatpush1.msra.mxu0 0.0
  %1040 = vmatprep.subr.mxu0 0.0
  %1041 = vmatpush1.msra.mxu0 0.0
  %1042 = vmatprep.subr.mxu0 0.0
  %1043 = vmatpush1.msra.mxu0 0.0
  %1044 = vmatprep.subr.mxu0 0.0
  %1045 = vmatpush1.msra.mxu0 0.0
  %1046 = vmatprep.subr.mxu0 0.0
  %1047 = vmatpush1.msra.mxu0 0.0
  %1048 = vmatprep.subr.mxu0 0.0
  %1049 = vmatpush1.msra.mxu0 0.0
  %1050 = vmatprep.subr.mxu0 0.0
  %1051 = vmatpush1.msra.mxu0 0.0
  %1052 = vmatprep.subr.mxu0 0.0
  %1053 = vmatpush1.msra.mxu0 0.0
  %1054 = vmatprep.subr.mxu0 %v198
  %1055 = vmatpush1.msra.mxu0 %v195
  %1056 = vmatprep.subr.mxu0 %v27
  %1057 = vmatpush1.msra.mxu0 %v26
  %1058 = vmatprep.subr.mxu0 0.0
  %1059 = vmatpush2.msra.mxu0 0.0
  %1060 = vmatprep.subr.mxu0 0.0
  %1061 = vmatpush2.msra.mxu0 0.0
  %1062 = vmatprep.subr.mxu0 0.0
  %1063 = vmatpush2.msra.mxu0 0.0
  %1064 = vmatprep.subr.mxu0 0.0
  %1065 = vmatpush2.msra.mxu0 0.0
  %1066 = vmatprep.subr.mxu0 0.0
  %1067 = vmatpush2.msra.mxu0 0.0
  %1068 = vmatprep.subr.mxu0 0.0
  %1069 = vmatpush2.msra.mxu0 0.0
  %1070 = vmatprep.subr.mxu0 0.0
  %1071 = vmatpush2.msra.mxu0 0.0
  %1072 = vmatprep.subr.mxu0 0.0
  %1073 = vmatpush2.msra.mxu0 0.0
  %1074 = vmatprep.subr.mxu0 0.0
  %1075 = vmatpush2.msra.mxu0 0.0
  %1076 = vmatprep.subr.mxu0 0.0
  %1077 = vmatpush2.msra.mxu0 0.0
  %1078 = vmatprep.subr.mxu0 0.0
  %1079 = vmatpush2.msra.mxu0 0.0
  %1080 = vmatprep.subr.mxu0 0.0
  %1081 = vmatpush2.msra.mxu0 0.0
  %1082 = vmatprep.subr.mxu0 0.0
  %1083 = vmatpush2.msra.mxu0 0.0
  %1084 = vmatprep.subr.mxu0 0.0
  %1085 = vmatpush2.msra.mxu0 0.0
  %1086 = vmatprep.subr.mxu0 0.0
  %1087 = vmatpush2.msra.mxu0 0.0
  %1088 = vmatprep.subr.mxu0 0.0
  %1089 = vmatpush2.msra.mxu0 0.0
  %1090 = vmatprep.mubr.f32.mxu0 0.0
  %1091 = vmatmul.mubr.f32.gmra.mxu0 %v1024
  %v1092 = vpop.f32.mrf.mxu0
  %v1093 = vadd.f32 0.0, %v1092
  %v1094 = vpop.f32.mrf.mxu0
  %v1095 = vadd.f32 0.0, %v1094
  %1096 = vdwg.mxu0
  %1097 = vmatprep.subr.mxu0 0.0
  %1098 = vmatpush1.msra.mxu0 0.0
  %1099 = vmatprep.subr.mxu0 0.0
  %1100 = vmatpush1.msra.mxu0 0.0
  %1101 = vmatprep.subr.mxu0 0.0
  %1102 = vmatpush1.msra.mxu0 0.0
  %1103 = vmatprep.subr.mxu0 0.0
  %1104 = vmatpush1.msra.mxu0 0.0
  %1105 = vmatprep.subr.mxu0 0.0
  %1106 = vmatpush1.msra.mxu0 0.0
  %1107 = vmatprep.subr.mxu0 0.0
  %1108 = vmatpush1.msra.mxu0 0.0
  %1109 = vmatprep.subr.mxu0 0.0
  %1110 = vmatpush1.msra.mxu0 0.0
  %1111 = vmatprep.subr.mxu0 0.0
  %1112 = vmatpush1.msra.mxu0 0.0
  %1113 = vmatprep.subr.mxu0 0.0
  %1114 = vmatpush1.msra.mxu0 0.0
  %1115 = vmatprep.subr.mxu0 0.0
  %1116 = vmatpush1.msra.mxu0 0.0
  %1117 = vmatprep.subr.mxu0 0.0
  %1118 = vmatpush1.msra.mxu0 0.0
  %1119 = vmatprep.subr.mxu0 0.0
  %1120 = vmatpush1.msra.mxu0 0.0
  %1121 = vmatprep.subr.mxu0 0.0
  %1122 = vmatpush1.msra.mxu0 0.0
  %1123 = vmatprep.subr.mxu0 0.0
  %1124 = vmatpush1.msra.mxu0 0.0
  %1125 = vmatprep.subr.mxu0 %v204
  %1126 = vmatpush1.msra.mxu0 %v201
  %1127 = vmatprep.subr.mxu0 %v29
  %1128 = vmatpush1.msra.mxu0 %v28
  %1129 = vmatprep.subr.mxu0 0.0
  %1130 = vmatpush2.msra.mxu0 0.0
  %1131 = vmatprep.subr.mxu0 0.0
  %1132 = vmatpush2.msra.mxu0 0.0
  %1133 = vmatprep.subr.mxu0 0.0
  %1134 = vmatpush2.msra.mxu0 0.0
  %1135 = vmatprep.subr.mxu0 0.0
  %1136 = vmatpush2.msra.mxu0 0.0
  %1137 = vmatprep.subr.mxu0 0.0
  %1138 = vmatpush2.msra.mxu0 0.0
  %1139 = vmatprep.subr.mxu0 0.0
  %1140 = vmatpush2.msra.mxu0 0.0
  %1141 = vmatprep.subr.mxu0 0.0
  %1142 = vmatpush2.msra.mxu0 0.0
  %1143 = vmatprep.subr.mxu0 0.0
  %1144 = vmatpush2.msra.mxu0 0.0
  %1145 = vmatprep.subr.mxu0 0.0
  %1146 = vmatpush2.msra.mxu0 0.0
  %1147 = vmatprep.subr.mxu0 0.0
  %1148 = vmatpush2.msra.mxu0 0.0
  %1149 = vmatprep.subr.mxu0 0.0
  %1150 = vmatpush2.msra.mxu0 0.0
  %1151 = vmatprep.subr.mxu0 0.0
  %1152 = vmatpush2.msra.mxu0 0.0
  %1153 = vmatprep.subr.mxu0 0.0
  %1154 = vmatpush2.msra.mxu0 0.0
  %1155 = vmatprep.subr.mxu0 0.0
  %1156 = vmatpush2.msra.mxu0 0.0
  %1157 = vmatprep.subr.mxu0 0.0
  %1158 = vmatpush2.msra.mxu0 0.0
  %1159 = vmatprep.subr.mxu0 0.0
  %1160 = vmatpush2.msra.mxu0 0.0
  %1161 = vmatprep.mubr.f32.mxu0 0.0
  %1162 = vmatmul.mubr.f32.gmra.mxu0 %v1024
  %v1163 = vpop.f32.mrf.mxu0
  %v1164 = vadd.f32 0.0, %v1163
  %v1165 = vpop.f32.mrf.mxu0
  %v1166 = vadd.f32 0.0, %v1165
  %1167 = vdwg.mxu0
  %v1168 = vadd.f32 %v177, %v1093
  %v1169 = vadd.f32 %v178, %v1095
  %v1170 = vadd.f32 %v179, %v1164
  %v1171 = vadd.f32 %v180, %v1166
  %v1172 = vtanh.pop %v1168
  %v1173 = vtanh.pop %v1169
  %v1174 = vtanh.pop %v1170
  %v1175 = vtanh.pop %v1171
  %v1176 = vadd.f32 %v1172, 1.0
  %v1177 = vmul.f32 %v1176, 0.5
  %v1178 = vadd.f32 %v1173, 1.0
  %v1179 = vmul.f32 %v1178, 0.5
  %v1180 = vadd.f32 %v1175, 1.0
  %v1181 = vmul.f32 %v1180, 0.5
  %v1182 = vmul.f32 %v1179, %v1020
  %v1183 = vmul.f32 %v1177, %v1174
  %v1184 = vadd.f32 %v1182, %v1183
  %v1185 = vtanh.pop %v1184
  %v1186 = vmul.f32 %v1181, %v1185
  %v1188 = vsel %vm189, %v1186, 0
  %1190 = vmatprep.subr.mxu0 0.0
  %1191 = vmatpush1.msra.mxu0 0.0
  %1192 = vmatprep.subr.mxu0 0.0
  %1193 = vmatpush1.msra.mxu0 0.0
  %1194 = vmatprep.subr.mxu0 0.0
  %1195 = vmatpush1.msra.mxu0 0.0
  %1196 = vmatprep.subr.mxu0 0.0
  %1197 = vmatpush1.msra.mxu0 0.0
  %1198 = vmatprep.subr.mxu0 0.0
  %1199 = vmatpush1.msra.mxu0 0.0
  %1200 = vmatprep.subr.mxu0 0.0
  %1201 = vmatpush1.msra.mxu0 0.0
  %1202 = vmatprep.subr.mxu0 0.0
  %1203 = vmatpush1.msra.mxu0 0.0
  %1204 = vmatprep.subr.mxu0 0.0
  %1205 = vmatpush1.msra.mxu0 0.0
  %1206 = vmatprep.subr.mxu0 0.0
  %1207 = vmatpush1.msra.mxu0 0.0
  %1208 = vmatprep.subr.mxu0 0.0
  %1209 = vmatpush1.msra.mxu0 0.0
  %1210 = vmatprep.subr.mxu0 0.0
  %1211 = vmatpush1.msra.mxu0 0.0
  %1212 = vmatprep.subr.mxu0 0.0
  %1213 = vmatpush1.msra.mxu0 0.0
  %1214 = vmatprep.subr.mxu0 0.0
  %1215 = vmatpush1.msra.mxu0 0.0
  %1216 = vmatprep.subr.mxu0 0.0
  %1217 = vmatpush1.msra.mxu0 0.0
  %1218 = vmatprep.subr.mxu0 %v198
  %1219 = vmatpush1.msra.mxu0 %v195
  %1220 = vmatprep.subr.mxu0 %v27
  %1221 = vmatpush1.msra.mxu0 %v26
  %1222 = vmatprep.subr.mxu0 0.0
  %1223 = vmatpush2.msra.mxu0 0.0
  %1224 = vmatprep.subr.mxu0 0.0
  %1225 = vmatpush2.msra.mxu0 0.0
  %1226 = vmatprep.subr.mxu0 0.0
  %1227 = vmatpush2.msra.mxu0 0.0
  %1228 = vmatprep.subr.mxu0 0.0
  %1229 = vmatpush2.msra.mxu0 0.0
  %1230 = vmatprep.subr.mxu0 0.0
  %1231 = vmatpush2.msra.mxu0 0.0
  %1232 = vmatprep.subr.mxu0 0.0
  %1233 = vmatpush2.msra.mxu0 0.0
  %1234 = vmatprep.subr.mxu0 0.0
  %1235 = vmatpush2.msra.mxu0 0.0
  %1236 = vmatprep.subr.mxu0 0.0
  %1237 = vmatpush2.msra.mxu0 0.0
  %1238 = vmatprep.subr.mxu0 0.0
  %1239 = vmatpush2.msra.mxu0 0.0
  %1240 = vmatprep.subr.mxu0 0.0
  %1241 = vmatpush2.msra.mxu0 0.0
  %1242 = vmatprep.subr.mxu0 0.0
  %1243 = vmatpush2.msra.mxu0 0.0
  %1244 = vmatprep.subr.mxu0 0.0
  %1245 = vmatpush2.msra.mxu0 0.0
  %1246 = vmatprep.subr.mxu0 0.0
  %1247 = vmatpush2.msra.mxu0 0.0
  %1248 = vmatprep.subr.mxu0 0.0
  %1249 = vmatpush2.msra.mxu0 0.0
  %1250 = vmatprep.subr.mxu0 0.0
  %1251 = vmatpush2.msra.mxu0 0.0
  %1252 = vmatprep.subr.mxu0 0.0
  %1253 = vmatpush2.msra.mxu0 0.0
  %1254 = vmatprep.mubr.f32.mxu0 0.0
  %1255 = vmatmul.mubr.f32.gmra.mxu0 %v1188
  %v1256 = vpop.f32.mrf.mxu0
  %v1257 = vadd.f32 0.0, %v1256
  %v1258 = vpop.f32.mrf.mxu0
  %v1259 = vadd.f32 0.0, %v1258
  %1260 = vdwg.mxu0
  %1261 = vmatprep.subr.mxu0 0.0
  %1262 = vmatpush1.msra.mxu0 0.0
  %1263 = vmatprep.subr.mxu0 0.0
  %1264 = vmatpush1.msra.mxu0 0.0
  %1265 = vmatprep.subr.mxu0 0.0
  %1266 = vmatpush1.msra.mxu0 0.0
  %1267 = vmatprep.subr.mxu0 0.0
  %1268 = vmatpush1.msra.mxu0 0.0
  %1269 = vmatprep.subr.mxu0 0.0
  %1270 = vmatpush1.msra.mxu0 0.0
  %1271 = vmatprep.subr.mxu0 0.0
  %1272 = vmatpush1.msra.mxu0 0.0
  %1273 = vmatprep.subr.mxu0 0.0
  %1274 = vmatpush1.msra.mxu0 0.0
  %1275 = vmatprep.subr.mxu0 0.0
  %1276 = vmatpush1.msra.mxu0 0.0
  %1277 = vmatprep.subr.mxu0 0.0
  %1278 = vmatpush1.msra.mxu0 0.0
  %1279 = vmatprep.subr.mxu0 0.0
  %1280 = vmatpush1.msra.mxu0 0.0
  %1281 = vmatprep.subr.mxu0 0.0
  %1282 = vmatpush1.msra.mxu0 0.0
  %1283 = vmatprep.subr.mxu0 0.0
  %1284 = vmatpush1.msra.mxu0 0.0
  %1285 = vmatprep.subr.mxu0 0.0
  %1286 = vmatpush1.msra.mxu0 0.0
  %1287 = vmatprep.subr.mxu0 0.0
  %1288 = vmatpush1.msra.mxu0 0.0
  %1289 = vmatprep.subr.mxu0 %v204
  %1290 = vmatpush1.msra.mxu0 %v201
  %1291 = vmatprep.subr.mxu0 %v29
  %1292 = vmatpush1.msra.mxu0 %v28
  %1293 = vmatprep.subr.mxu0 0.0
  %1294 = vmatpush2.msra.mxu0 0.0
  %1295 = vmatprep.subr.mxu0 0.0
  %1296 = vmatpush2.msra.mxu0 0.0
  %1297 = vmatprep.subr.mxu0 0.0
  %1298 = vmatpush2.msra.mxu0 0.0
  %1299 = vmatprep.subr.mxu0 0.0
  %1300 = vmatpush2.msra.mxu0 0.0
  %1301 = vmatprep.subr.mxu0 0.0
  %1302 = vmatpush2.msra.mxu0 0.0
  %1303 = vmatprep.subr.mxu0 0.0
  %1304 = vmatpush2.msra.mxu0 0.0
  %1305 = vmatprep.subr.mxu0 0.0
  %1306 = vmatpush2.msra.mxu0 0.0
  %1307 = vmatprep.subr.mxu0 0.0
  %1308 = vmatpush2.msra.mxu0 0.0
  %1309 = vmatprep.subr.mxu0 0.0
  %1310 = vmatpush2.msra.mxu0 0.0
  %1311 = vmatprep.subr.mxu0 0.0
  %1312 = vmatpush2.msra.mxu0 0.0
  %1313 = vmatprep.subr.mxu0 0.0
  %1314 = vmatpush2.msra.mxu0 0.0
  %1315 = vmatprep.subr.mxu0 0.0
  %1316 = vmatpush2.msra.mxu0 0.0
  %1317 = vmatprep.subr.mxu0 0.0
  %1318 = vmatpush2.msra.mxu0 0.0
  %1319 = vmatprep.subr.mxu0 0.0
  %1320 = vmatpush2.msra.mxu0 0.0
  %1321 = vmatprep.subr.mxu0 0.0
  %1322 = vmatpush2.msra.mxu0 0.0
  %1323 = vmatprep.subr.mxu0 0.0
  %1324 = vmatpush2.msra.mxu0 0.0
  %1325 = vmatprep.mubr.f32.mxu0 0.0
  %1326 = vmatmul.mubr.f32.gmra.mxu0 %v1188
  %v1327 = vpop.f32.mrf.mxu0
  %v1328 = vadd.f32 0.0, %v1327
  %v1329 = vpop.f32.mrf.mxu0
  %v1330 = vadd.f32 0.0, %v1329
  %1331 = vdwg.mxu0
  %v1332 = vadd.f32 %v181, %v1257
  %v1333 = vadd.f32 %v182, %v1259
  %v1334 = vadd.f32 %v183, %v1328
  %v1335 = vadd.f32 %v184, %v1330
  %v1336 = vtanh.pop %v1332
  %v1337 = vtanh.pop %v1333
  %v1338 = vtanh.pop %v1334
  %v1339 = vtanh.pop %v1335
  %v1340 = vadd.f32 %v1336, 1.0
  %v1341 = vmul.f32 %v1340, 0.5
  %v1342 = vadd.f32 %v1337, 1.0
  %v1343 = vmul.f32 %v1342, 0.5
  %v1344 = vadd.f32 %v1339, 1.0
  %v1345 = vmul.f32 %v1344, 0.5
  %v1346 = vmul.f32 %v1343, %v1184
  %v1347 = vmul.f32 %v1341, %v1338
  %v1348 = vadd.f32 %v1346, %v1347
  %v1349 = vtanh.pop %v1348
  %v1350 = vmul.f32 %v1345, %v1349
  %v1352 = vsel %vm189, %v1350, 0
  %1354 = vmatprep.subr.mxu0 0.0
  %1355 = vmatpush1.msra.mxu0 0.0
  %1356 = vmatprep.subr.mxu0 0.0
  %1357 = vmatpush1.msra.mxu0 0.0
  %1358 = vmatprep.subr.mxu0 0.0
  %1359 = vmatpush1.msra.mxu0 0.0
  %1360 = vmatprep.subr.mxu0 0.0
  %1361 = vmatpush1.msra.mxu0 0.0
  %1362 = vmatprep.subr.mxu0 0.0
  %1363 = vmatpush1.msra.mxu0 0.0
  %1364 = vmatprep.subr.mxu0 0.0
  %1365 = vmatpush1.msra.mxu0 0.0
  %1366 = vmatprep.subr.mxu0 0.0
  %1367 = vmatpush1.msra.mxu0 0.0
  %1368 = vmatprep.subr.mxu0 0.0
  %1369 = vmatpush1.msra.mxu0 0.0
  %1370 = vmatprep.subr.mxu0 0.0
  %1371 = vmatpush1.msra.mxu0 0.0
  %1372 = vmatprep.subr.mxu0 0.0
  %1373 = vmatpush1.msra.mxu0 0.0
  %1374 = vmatprep.subr.mxu0 0.0
  %1375 = vmatpush1.msra.mxu0 0.0
  %1376 = vmatprep.subr.mxu0 0.0
  %1377 = vmatpush1.msra.mxu0 0.0
  %1378 = vmatprep.subr.mxu0 0.0
  %1379 = vmatpush1.msra.mxu0 0.0
  %1380 = vmatprep.subr.mxu0 0.0
  %1381 = vmatpush1.msra.mxu0 0.0
  %1382 = vmatprep.subr.mxu0 %v198
  %1383 = vmatpush1.msra.mxu0 %v195
  %1384 = vmatprep.subr.mxu0 %v27
  %1385 = vmatpush1.msra.mxu0 %v26
  %1386 = vmatprep.subr.mxu0 0.0
  %1387 = vmatpush2.msra.mxu0 0.0
  %1388 = vmatprep.subr.mxu0 0.0
  %1389 = vmatpush2.msra.mxu0 0.0
  %1390 = vmatprep.subr.mxu0 0.0
  %1391 = vmatpush2.msra.mxu0 0.0
  %1392 = vmatprep.subr.mxu0 0.0
  %1393 = vmatpush2.msra.mxu0 0.0
  %1394 = vmatprep.subr.mxu0 0.0
  %1395 = vmatpush2.msra.mxu0 0.0
  %1396 = vmatprep.subr.mxu0 0.0
  %1397 = vmatpush2.msra.mxu0 0.0
  %1398 = vmatprep.subr.mxu0 0.0
  %1399 = vmatpush2.msra.mxu0 0.0
  %1400 = vmatprep.subr.mxu0 0.0
  %1401 = vmatpush2.msra.mxu0 0.0
  %1402 = vmatprep.subr.mxu0 0.0
  %1403 = vmatpush2.msra.mxu0 0.0
  %1404 = vmatprep.subr.mxu0 0.0
  %1405 = vmatpush2.msra.mxu0 0.0
  %1406 = vmatprep.subr.mxu0 0.0
  %1407 = vmatpush2.msra.mxu0 0.0
  %1408 = vmatprep.subr.mxu0 0.0
  %1409 = vmatpush2.msra.mxu0 0.0
  %1410 = vmatprep.subr.mxu0 0.0
  %1411 = vmatpush2.msra.mxu0 0.0
  %1412 = vmatprep.subr.mxu0 0.0
  %1413 = vmatpush2.msra.mxu0 0.0
  %1414 = vmatprep.subr.mxu0 0.0
  %1415 = vmatpush2.msra.mxu0 0.0
  %1416 = vmatprep.subr.mxu0 0.0
  %1417 = vmatpush2.msra.mxu0 0.0
  %1418 = vmatprep.mubr.f32.mxu0 0.0
  %1419 = vmatmul.mubr.f32.gmra.mxu0 %v1352
  %v1420 = vpop.f32.mrf.mxu0
  %v1421 = vadd.f32 0.0, %v1420
  %v1422 = vpop.f32.mrf.mxu0
  %v1423 = vadd.f32 0.0, %v1422
  %1424 = vdwg.mxu0
  %1425 = vmatprep.subr.mxu0 0.0
  %1426 = vmatpush1.msra.mxu0 0.0
  %1427 = vmatprep.subr.mxu0 0.0
  %1428 = vmatpush1.msra.mxu0 0.0
  %1429 = vmatprep.subr.mxu0 0.0
  %1430 = vmatpush1.msra.mxu0 0.0
  %1431 = vmatprep.subr.mxu0 0.0
  %1432 = vmatpush1.msra.mxu0 0.0
  %1433 = vmatprep.subr.mxu0 0.0
  %1434 = vmatpush1.msra.mxu0 0.0
  %1435 = vmatprep.subr.mxu0 0.0
  %1436 = vmatpush1.msra.mxu0 0.0
  %1437 = vmatprep.subr.mxu0 0.0
  %1438 = vmatpush1.msra.mxu0 0.0
  %1439 = vmatprep.subr.mxu0 0.0
  %1440 = vmatpush1.msra.mxu0 0.0
  %1441 = vmatprep.subr.mxu0 0.0
  %1442 = vmatpush1.msra.mxu0 0.0
  %1443 = vmatprep.subr.mxu0 0.0
  %1444 = vmatpush1.msra.mxu0 0.0
  %1445 = vmatprep.subr.mxu0 0.0
  %1446 = vmatpush1.msra.mxu0 0.0
  %1447 = vmatprep.subr.mxu0 0.0
  %1448 = vmatpush1.msra.mxu0 0.0
  %1449 = vmatprep.subr.mxu0 0.0
  %1450 = vmatpush1.msra.mxu0 0.0
  %1451 = vmatprep.subr.mxu0 0.0
  %1452 = vmatpush1.msra.mxu0 0.0
  %1453 = vmatprep.subr.mxu0 %v204
  %1454 = vmatpush1.msra.mxu0 %v201
  %1455 = vmatprep.subr.mxu0 %v29
  %1456 = vmatpush1.msra.mxu0 %v28
  %1457 = vmatprep.subr.mxu0 0.0
  %1458 = vmatpush2.msra.mxu0 0.0
  %1459 = vmatprep.subr.mxu0 0.0
  %1460 = vmatpush2.msra.mxu0 0.0
  %1461 = vmatprep.subr.mxu0 0.0
  %1462 = vmatpush2.msra.mxu0 0.0
  %1463 = vmatprep.subr.mxu0 0.0
  %1464 = vmatpush2.msra.mxu0 0.0
  %1465 = vmatprep.subr.mxu0 0.0
  %1466 = vmatpush2.msra.mxu0 0.0
  %1467 = vmatprep.subr.mxu0 0.0
  %1468 = vmatpush2.msra.mxu0 0.0
  %1469 = vmatprep.subr.mxu0 0.0
  %1470 = vmatpush2.msra.mxu0 0.0
  %1471 = vmatprep.subr.mxu0 0.0
  %1472 = vmatpush2.msra.mxu0 0.0
  %1473 = vmatprep.subr.mxu0 0.0
  %1474 = vmatpush2.msra.mxu0 0.0
  %1475 = vmatprep.subr.mxu0 0.0
  %1476 = vmatpush2.msra.mxu0 0.0
  %1477 = vmatprep.subr.mxu0 0.0
  %1478 = vmatpush2.msra.mxu0 0.0
  %1479 = vmatprep.subr.mxu0 0.0
  %1480 = vmatpush2.msra.mxu0 0.0
  %1481 = vmatprep.subr.mxu0 0.0
  %1482 = vmatpush2.msra.mxu0 0.0
  %1483 = vmatprep.subr.mxu0 0.0
  %1484 = vmatpush2.msra.mxu0 0.0
  %1485 = vmatprep.subr.mxu0 0.0
  %1486 = vmatpush2.msra.mxu0 0.0
  %1487 = vmatprep.subr.mxu0 0.0
  %1488 = vmatpush2.msra.mxu0 0.0
  %1489 = vmatprep.mubr.f32.mxu0 0.0
  %1490 = vmatmul.mubr.f32.gmra.mxu0 %v1352
  %v1491 = vpop.f32.mrf.mxu0
  %v1492 = vadd.f32 0.0, %v1491
  %v1493 = vpop.f32.mrf.mxu0
  %v1494 = vadd.f32 0.0, %v1493
  %1495 = vdwg.mxu0
  %v1496 = vadd.f32 %v185, %v1421
  %v1497 = vadd.f32 %v186, %v1423
  %v1498 = vadd.f32 %v187, %v1492
  %v1499 = vadd.f32 %v188, %v1494
  %v1500 = vtanh.pop %v1496
  %v1501 = vtanh.pop %v1497
  %v1502 = vtanh.pop %v1498
  %v1503 = vtanh.pop %v1499
  %v1504 = vadd.f32 %v1500, 1.0
  %v1505 = vmul.f32 %v1504, 0.5
  %v1506 = vadd.f32 %v1501, 1.0
  %v1507 = vmul.f32 %v1506, 0.5
  %v1508 = vadd.f32 %v1503, 1.0
  %v1509 = vmul.f32 %v1508, 0.5
  %v1510 = vmul.f32 %v1507, %v1348
  %v1511 = vmul.f32 %v1505, %v1502
  %v1512 = vadd.f32 %v1510, %v1511
  %v1513 = vtanh.pop %v1512
  %v1514 = vmul.f32 %v1509, %v1513
  %v1515 = vld [vmem:[%s4] sm:$0xff]
  %v1516 = vld [vmem:[%s4 + $0x8] sm:$0xff]
  %v1517 = vld [vmem:[%s4 + $0x10] sm:$0xff]
  %v1518 = vld [vmem:[%s4 + $0x18] sm:$0xff]
  %v1519 = vld [vmem:[%s4 + $0x20] sm:$0xff]
  %v1520 = vld [vmem:[%s4 + $0x28] sm:$0xff]
  %v1521 = vld [vmem:[%s4 + $0x30] sm:$0xff]
  %v1522 = vld [vmem:[%s4 + $0x38] sm:$0xff]
  %v1523 = vld [vmem:[%s4 + $0x40] sm:$0xff]
  %v1524 = vld [vmem:[%s4 + $0x48] sm:$0xff]
  %v1525 = vld [vmem:[%s4 + $0x50] sm:$0xff]
  %v1526 = vld [vmem:[%s4 + $0x58] sm:$0xff]
  %v1527 = vld [vmem:[%s4 + $0x60] sm:$0xff]
  %v1528 = vld [vmem:[%s4 + $0x68] sm:$0xff]
  %v1529 = vld [vmem:[%s4 + $0x70] sm:$0xff]
  %v1530 = vld [vmem:[%s4 + $0x78] sm:$0xff]
  %v1531 = vld [vmem:[#allocation2] sm:$0x1]
  %v1533 = vlaneseq
  %v1534 = vshrl.u32 %v1533, 7
  %v1535 = vsub.s32 0, %v1534
  %v1536 = vrot.slane %v1531, %v1535
  %1538 = vmatprep.subr.mxu0 0.0
  %1539 = vmatpush1.msra.mxu0 %v1530
  %1540 = vmatprep.subr.mxu0 0.0
  %1541 = vmatpush1.msra.mxu0 %v1529
  %1542 = vmatprep.subr.mxu0 0.0
  %1543 = vmatpush1.msra.mxu0 %v1528
  %1544 = vmatprep.subr.mxu0 0.0
  %1545 = vmatpush1.msra.mxu0 %v1527
  %1546 = vmatprep.subr.mxu0 0.0
  %1547 = vmatpush1.msra.mxu0 %v1526
  %1548 = vmatprep.subr.mxu0 0.0
  %1549 = vmatpush1.msra.mxu0 %v1525
  %1550 = vmatprep.subr.mxu0 0.0
  %1551 = vmatpush1.msra.mxu0 %v1524
  %1552 = vmatprep.subr.mxu0 0.0
  %1553 = vmatpush1.msra.mxu0 %v1523
  %1554 = vmatprep.subr.mxu0 0.0
  %1555 = vmatpush1.msra.mxu0 %v1522
  %1556 = vmatprep.subr.mxu0 0.0
  %1557 = vmatpush1.msra.mxu0 %v1521
  %1558 = vmatprep.subr.mxu0 0.0
  %1559 = vmatpush1.msra.mxu0 %v1520
  %1560 = vmatprep.subr.mxu0 0.0
  %1561 = vmatpush1.msra.mxu0 %v1519
  %1562 = vmatprep.subr.mxu0 0.0
  %1563 = vmatpush1.msra.mxu0 %v1518
  %1564 = vmatprep.subr.mxu0 0.0
  %1565 = vmatpush1.msra.mxu0 %v1517
  %1566 = vmatprep.subr.mxu0 0.0
  %1567 = vmatpush1.msra.mxu0 %v1516
  %1568 = vmatprep.subr.mxu0 0.0
  %1569 = vmatpush1.msra.mxu0 %v1515
  %1570 = vmatprep.subr.mxu0 0.0
  %1571 = vmatpush2.msra.mxu0 0.0
  %1572 = vmatprep.subr.mxu0 0.0
  %1573 = vmatpush2.msra.mxu0 0.0
  %1574 = vmatprep.subr.mxu0 0.0
  %1575 = vmatpush2.msra.mxu0 0.0
  %1576 = vmatprep.subr.mxu0 0.0
  %1577 = vmatpush2.msra.mxu0 0.0
  %1578 = vmatprep.subr.mxu0 0.0
  %1579 = vmatpush2.msra.mxu0 0.0
  %1580 = vmatprep.subr.mxu0 0.0
  %1581 = vmatpush2.msra.mxu0 0.0
  %1582 = vmatprep.subr.mxu0 0.0
  %1583 = vmatpush2.msra.mxu0 0.0
  %1584 = vmatprep.subr.mxu0 0.0
  %1585 = vmatpush2.msra.mxu0 0.0
  %1586 = vmatprep.subr.mxu0 0.0
  %1587 = vmatpush2.msra.mxu0 0.0
  %1588 = vmatprep.subr.mxu0 0.0
  %1589 = vmatpush2.msra.mxu0 0.0
  %1590 = vmatprep.subr.mxu0 0.0
  %1591 = vmatpush2.msra.mxu0 0.0
  %1592 = vmatprep.subr.mxu0 0.0
  %1593 = vmatpush2.msra.mxu0 0.0
  %1594 = vmatprep.subr.mxu0 0.0
  %1595 = vmatpush2.msra.mxu0 0.0
  %1596 = vmatprep.subr.mxu0 0.0
  %1597 = vmatpush2.msra.mxu0 0.0
  %1598 = vmatprep.subr.mxu0 0.0
  %1599 = vmatpush2.msra.mxu0 0.0
  %1600 = vmatprep.subr.mxu0 0.0
  %1601 = vmatpush2.msra.mxu0 0.0
  %1602 = vmatprep.mubr.f32.mxu0 0.0
  %1603 = vmatmul.mubr.f32.gmra.mxu0 %v1514
  %v1604 = vpop.f32.mrf.mxu0
  %v1605 = vadd.f32 %v1536, %v1604
  %v1606 = vpop.f32.mrf.mxu0
  %1607 = vdwg.mxu0
  %vm1608 = vcmask 3072
  %1609 = vst.msk [vmem:[%s6] sm:$0xf] %vm1608, %v1605
  // Predicated region
  $region26: #{tpu_custom_call.1} parent=0 // pred_check
    _
  $region27: #{tpu_custom_call.1} parent=0 // pred_check_branch
    %1611 = sbr.rel (0) target = $region29
  $region28: #{tpu_custom_call.1} parent=0 // pred_region
    _
  $region29: #{tpu_custom_call.1} parent=0 // pred_fallthru
    _
  // Predicated region
  $region30: #{tpu_custom_call.1} parent=0 // pred_check
    _
  $region31: #{tpu_custom_call.1} parent=0 // pred_check_branch
    %1613 = sbr.rel (0) target = $region33
  $region32: #{tpu_custom_call.1} parent=0 // pred_region
    _
  $region33: #{tpu_custom_call.1} parent=0 // pred_fallthru
    _

</llo_original>
